<compile_context>
chip_gen: v5e
topology: v5e:2x2
jax: 0.10.0
libtpu: 0.0.40
codegen_flags: <defaults>
</compile_context>

<pallas_src>
import functools

import jax
import jax.numpy as jnp
import numpy as np
from jax.experimental import pallas as pl
from jax.experimental.pallas import tpu as pltpu

_LANE = 128          # K-padding per ky block and pooled-output half width
_KH = 5              # conv kernel height / width


# ----------------------------------------------------------------------------
# Fused forward kernel: conv1+pool -> conv2+pool -> fc1 -> fc2 -> fc3
# ----------------------------------------------------------------------------
def _cnn_cifar_kernel(x_ref, t1_ref, b1_ref, t2_ref, b2_ref,
                      wf1_ref, bf1_ref, wf2_ref, bf2_ref, wf3_ref, bf3_ref,
                      o_ref):
    n = x_ref.shape[0]
    half = t1_ref.shape[1] // 2               # 128

    def conv_pool(x, t_ref, b_ref):
        """x: (n, H, 128) bf16, rows=(n,h), cols=(w,c) zero-padded to 128 lanes.
        One K=640 matmul (5 ky row-windows concatenated along lanes) against a
        banded weight whose output columns are [even-wo half | odd-wo half],
        then bias + ReLU and the 2x2 maxpool: W-direction = lane-half max,
        H-direction = row-pair max.  Returns (n, (H-4)//2, 128) f32 already in
        the zero-padded (w/2, c) lane layout the next layer expects."""
        h_in = x.shape[1]
        ho = h_in - (_KH - 1)
        xc = jnp.concatenate([x[:, ky:ky + ho, :] for ky in range(_KH)], axis=-1)
        xc = xc.reshape(n * ho, _KH * x.shape[2])
        a = jnp.dot(xc, t_ref[...], preferred_element_type=jnp.float32)
        a = jnp.maximum(a + b_ref[...], 0.0)                   # (n*ho, 2*half) f32
        p = jnp.maximum(a[:, :half], a[:, half:])              # W-pool (lane halves)
        p = p.reshape(n, ho // 2, 2, half)
        return jnp.maximum(p[:, :, 0, :], p[:, :, 1, :])       # H-pool (row pairs)

    # conv1 + ReLU + pool : (n, 32, 128) -> (n, 14, 128)  [valid cols: 14*6 = 84]
    h1 = conv_pool(x_ref[...], t1_ref, b1_ref).astype(jnp.bfloat16)
    # conv2 + ReLU + pool : (n, 14, 128) -> (n,  5, 128)  [valid cols: 5*16 = 80]
    h2 = conv_pool(h1, t2_ref, b2_ref)

    # fc1 weight rows were laid out on the host to match this zero-padded
    # (h, w, c) flatten (pad rows are zero), so no runtime gather/transpose.
    flat = h2.reshape(n, h2.shape[1] * half).astype(jnp.bfloat16)   # (n, 640)

    z = jnp.dot(flat, wf1_ref[...], preferred_element_type=jnp.float32) + bf1_ref[...]
    z = jnp.maximum(z, 0.0).astype(jnp.bfloat16)
    z = jnp.dot(z, wf2_ref[...], preferred_element_type=jnp.float32) + bf2_ref[...]
    z = jnp.maximum(z, 0.0).astype(jnp.bfloat16)
    # wf3/bf3 are zero-padded to 128 output lanes -> lane-dense unmasked store.
    o_ref[...] = jnp.dot(z, wf3_ref[...],
                         preferred_element_type=jnp.float32) + bf3_ref[...]


# ----------------------------------------------------------------------------
# Wrapper
# ----------------------------------------------------------------------------
def _pick_batch_tile(n):
    """Largest divisor tile (<=128); prefer >=2 grid steps so the 'parallel'
    batch axis actually shards across v7x's two TensorCores."""
    for need_two in (True, False):
        for t in (128, 64, 32, 16, 8):
            if n % t == 0 and (not need_two or n // t >= 2):
                return t
    return n


@functools.partial(jax.jit, static_argnames=("num_classes",))
def cnn_cifar_forward(x_nchw, params, num_classes):
    """x_nchw: (N, 3, 32, 32) float32 -> (N, num_classes) float32 logits."""
    n, _, h, w = x_nchw.shape

    # Only layout glue outside the kernel (applied to the tiny input tensor):
    # NCHW -> rows=(n,h), cols=(w,c), zero-padded to 128 lanes, cast to bf16.
    x = jnp.transpose(x_nchw, (0, 2, 3, 1))                         # NHWC
    x_rows = x.reshape(n, h, w * x.shape[-1])
    assert x_rows.shape[-1] <= _LANE
    x_rows = jnp.pad(x_rows, ((0, 0), (0, 0), (0, _LANE - x_rows.shape[-1])))
    x_rows = x_rows.astype(jnp.bfloat16)                            # (N, 32, 128)

    n_tile = _pick_batch_tile(n)
    grid = (n // n_tile,)

    const2 = lambda i: (0, 0)
    weight_spec = lambda a: pl.BlockSpec(a.shape, const2)
    # Weights use constant block indices so the pipeline fetches them once;
    # they are <1 MB in bf16, so single-buffering them is not worth the risk.

    out_padded = pl.pallas_call(
        _cnn_cifar_kernel,
        out_shape=jax.ShapeDtypeStruct((n, _LANE), jnp.float32),
        grid=grid,
        in_specs=[
            pl.BlockSpec((n_tile, x_rows.shape[1], _LANE), lambda i: (i, 0, 0)),
            weight_spec(params["t1"]), weight_spec(params["b1"]),
            weight_spec(params["t2"]), weight_spec(params["b2"]),
            weight_spec(params["wf1"]), weight_spec(params["bf1"]),
            weight_spec(params["wf2"]), weight_spec(params["bf2"]),
            weight_spec(params["wf3"]), weight_spec(params["bf3"]),
        ],
        out_specs=pl.BlockSpec((n_tile, _LANE), lambda i: (i, 0)),
        compiler_params=pltpu.CompilerParams(
            dimension_semantics=("parallel",),
            vmem_limit_bytes=48 * 1024 * 1024),
    )(x_rows, params["t1"], params["b1"], params["t2"], params["b2"],
      params["wf1"], params["bf1"], params["wf2"], params["bf2"],
      params["wf3"], params["bf3"])

    return out_padded[:, :num_classes]


# ----------------------------------------------------------------------------
# Parameter construction (PyTorch layouts) and one-time host-side repacking
# ----------------------------------------------------------------------------
def init_torch_params(key, num_classes=10):
    """Random parameters in PyTorch's native layouts:
    Conv2d weight (Cout, Cin, kh, kw); Linear weight (out, in)."""
    ks = jax.random.split(key, 10)
    s = 0.05
    rnd = lambda k, shape: jax.random.normal(k, shape, jnp.float32) * s
    return {
        "conv1_w": rnd(ks[0], (6, 3, 5, 5)),    "conv1_b": rnd(ks[1], (6,)),
        "conv2_w": rnd(ks[2], (16, 6, 5, 5)),   "conv2_b": rnd(ks[3], (16,)),
        "fc1_w": rnd(ks[4], (120, 16 * 5 * 5)), "fc1_b": rnd(ks[5], (120,)),
        "fc2_w": rnd(ks[6], (84, 120)),         "fc2_b": rnd(ks[7], (84,)),
        "fc3_w": rnd(ks[8], (num_classes, 84)), "fc3_b": rnd(ks[9], (num_classes,)),
    }


def _banded_conv_weight(w_torch, w_in, k_pad, out_half):
    """(Cout,Cin,5,5) -> (5*k_pad, 2*out_half) stacked banded matrix T with
        T[ky*k_pad + (wo+kx)*Cin + ci, (wo%2)*out_half + (wo//2)*Cout + co]
            = w[co, ci, ky, kx]
    so a valid 5x5 conv over image rows in (w, c) lane layout is a single
    matmul of the ky-concatenated row windows against T, and the 2x2 W-pool of
    the result is max(out[:, :out_half], out[:, out_half:]) with columns
    already in (w/2, c) order, zero-padded to out_half lanes."""
    w = np.asarray(w_torch, np.float32)
    cout, cin, kh, kw = w.shape
    w_out = w_in - kw + 1
    assert w_in * cin <= k_pad and (w_out // 2) * cout <= out_half and w_out % 2 == 0
    t = np.zeros((kh * k_pad, 2 * out_half), np.float32)
    for ky in range(kh):
        for kx in range(kw):
            blk = w[:, :, ky, kx].T                               # (Cin, Cout)
            for wo in range(w_out):
                r = ky * k_pad + (wo + kx) * cin
                c = (wo % 2) * out_half + (wo // 2) * cout
                t[r:r + cin, c:c + cout] = blk
    return t


def _pooled_bias(b_torch, w_out, out_half):
    """Bias tiled into the repacked (even-half | odd-half) conv column order."""
    b = np.asarray(b_torch, np.float32)
    cout = b.shape[0]
    out = np.zeros((1, 2 * out_half), np.float32)
    for wo in range(w_out):
        c = (wo % 2) * out_half + (wo // 2) * cout
        out[0, c:c + cout] = b
    return out


def _fc1_weight(fc1_w_torch, cout, hw, out_half):
    """torch fc1 weight (120, cout*hw*hw), input index c*hw*hw + h*hw + w (NCHW
    flatten) -> (hw*out_half, 120) rows matching the kernel's zero-padded
    (h, w, c) flatten index h*out_half + w*cout + c (pad rows stay zero)."""
    w = np.asarray(fc1_w_torch, np.float32)
    wp = np.zeros((hw * out_half, w.shape[0]), np.float32)
    for c in range(cout):
        for h in range(hw):
            for x in range(hw):
                wp[h * out_half + x * cout + c, :] = w[:, c * hw * hw + h * hw + x]
    return wp


def prepare_params(tp):
    """One-time host-side repack of PyTorch-layout params into kernel layouts
    (stacked banded conv weights, pool-friendly column order, bf16 operands)."""
    num_classes = int(tp["fc3_w"].shape[0])
    assert num_classes <= _LANE
    bf16 = jnp.bfloat16

    t1 = _banded_conv_weight(tp["conv1_w"], 32, _LANE, _LANE)   # (640, 256)
    t2 = _banded_conv_weight(tp["conv2_w"], 14, _LANE, _LANE)   # (640, 256)
    b1 = _pooled_bias(tp["conv1_b"], 28, _LANE)                 # (1, 256)
    b2 = _pooled_bias(tp["conv2_b"], 10, _LANE)                 # (1, 256)
    wf1 = _fc1_weight(tp["fc1_w"], 16, 5, _LANE)                # (640, 120)

    wf3 = np.zeros((tp["fc3_w"].shape[1], _LANE), np.float32)   # (84, 128)
    wf3[:, :num_classes] = np.asarray(tp["fc3_w"], np.float32).T
    bf3 = np.zeros((1, _LANE), np.float32)
    bf3[0, :num_classes] = np.asarray(tp["fc3_b"], np.float32)

    return {
        "t1": jnp.asarray(t1, bf16), "b1": jnp.asarray(b1),
        "t2": jnp.asarray(t2, bf16), "b2": jnp.asarray(b2),
        "wf1": jnp.asarray(wf1, bf16),
        "bf1": jnp.asarray(np.asarray(tp["fc1_b"], np.float32)[None, :]),
        "wf2": jnp.asarray(np.asarray(tp["fc2_w"], np.float32).T, bf16),
        "bf2": jnp.asarray(np.asarray(tp["fc2_b"], np.float32)[None, :]),
        "wf3": jnp.asarray(wf3, bf16), "bf3": jnp.asarray(bf3),
    }


# ----------------------------------------------------------------------------
# Pure-XLA reference (independent of the kernel's weight repacking)
# ----------------------------------------------------------------------------
def reference_forward(x_nchw, tp):
    prec = jax.lax.Precision.HIGHEST

    def conv(x, w, b):
        dn = jax.lax.conv_dimension_numbers(x.shape, w.shape, ("NCHW", "OIHW", "NCHW"))
        y = jax.lax.conv_general_dilated(x, w, (1, 1), "VALID",
                                         dimension_numbers=dn, precision=prec)
        return y + b[None, :, None, None]

    def pool(x):
        return jax.lax.reduce_window(x, -jnp.inf, jax.lax.max,
                                     (1, 1, 2, 2), (1, 1, 2, 2), "VALID")

    x = pool(jax.nn.relu(conv(x_nchw, tp["conv1_w"], tp["conv1_b"])))
    x = pool(jax.nn.relu(conv(x, tp["conv2_w"], tp["conv2_b"])))
    x = x.reshape(x.shape[0], -1)                                   # NCHW flatten
    x = jax.nn.relu(jnp.dot(x, tp["fc1_w"].T, precision=prec) + tp["fc1_b"])
    x = jax.nn.relu(jnp.dot(x, tp["fc2_w"].T, precision=prec) + tp["fc2_b"])
    return jnp.dot(x, tp["fc3_w"].T, precision=prec) + tp["fc3_b"]


if __name__ == "__main__":
    key = jax.random.PRNGKey(0)
    k_params, k_x = jax.random.split(key)
    num_classes = 10

    torch_params = init_torch_params(k_params, num_classes=num_classes)
    params = prepare_params(torch_params)

    x = jax.random.normal(k_x, (2, 3, 32, 32), jnp.float32)         # NCHW, like PyTorch

    logits = cnn_cifar_forward(x, params, num_classes=num_classes)
    jax.block_until_ready(logits)
    assert logits.shape == (2, num_classes) and logits.dtype == jnp.float32

    ref = reference_forward(x, torch_params)
    # bf16 matmul operands (f32 accumulation) -> slightly looser tolerance.
    np.testing.assert_allclose(np.asarray(logits), np.asarray(ref),
                               rtol=2e-2, atol=2e-2)
    print("KERNEL_OK")
</pallas_src>

<mosaic_0001>
module attributes {stable_mosaic.version = 11 : i64} {
  func.func @_cnn_cifar_kernel(%arg0: i32, %arg1: memref<2x32x128xbf16, #tpu.memory_space<vmem>>, %arg2: memref<640x256xbf16, #tpu.memory_space<vmem>>, %arg3: memref<1x256xf32, #tpu.memory_space<vmem>>, %arg4: memref<640x256xbf16, #tpu.memory_space<vmem>>, %arg5: memref<1x256xf32, #tpu.memory_space<vmem>>, %arg6: memref<640x120xbf16, #tpu.memory_space<vmem>>, %arg7: memref<1x120xf32, #tpu.memory_space<vmem>>, %arg8: memref<120x84xbf16, #tpu.memory_space<vmem>>, %arg9: memref<1x84xf32, #tpu.memory_space<vmem>>, %arg10: memref<84x128xbf16, #tpu.memory_space<vmem>>, %arg11: memref<1x128xf32, #tpu.memory_space<vmem>>, %arg12: memref<2x128xf32, #tpu.memory_space<vmem>>) attributes {dimension_semantics = [#tpu.dimension_semantics<parallel>], iteration_bounds = array<i64: 1>, scalar_prefetch = 0 : i64, scratch_operands = 0 : i64, tpu.core_type = #tpu.core_type<tc>, window_params = [{transform_indices = @transform_0, window_bounds = array<i64: 2, 32, 128>}, {pipeline_mode = #tpu.pipeline_mode<synchronous>, transform_indices = @transform_1, window_bounds = array<i64: 640, 256>}, {pipeline_mode = #tpu.pipeline_mode<synchronous>, transform_indices = @transform_2, window_bounds = array<i64: 1, 256>}, {pipeline_mode = #tpu.pipeline_mode<synchronous>, transform_indices = @transform_3, window_bounds = array<i64: 640, 256>}, {pipeline_mode = #tpu.pipeline_mode<synchronous>, transform_indices = @transform_4, window_bounds = array<i64: 1, 256>}, {pipeline_mode = #tpu.pipeline_mode<synchronous>, transform_indices = @transform_5, window_bounds = array<i64: 640, 120>}, {pipeline_mode = #tpu.pipeline_mode<synchronous>, transform_indices = @transform_6, window_bounds = array<i64: 1, 120>}, {pipeline_mode = #tpu.pipeline_mode<synchronous>, transform_indices = @transform_7, window_bounds = array<i64: 120, 84>}, {pipeline_mode = #tpu.pipeline_mode<synchronous>, transform_indices = @transform_8, window_bounds = array<i64: 1, 84>}, {pipeline_mode = #tpu.pipeline_mode<synchronous>, transform_indices = @transform_9, window_bounds = array<i64: 84, 128>}, {pipeline_mode = #tpu.pipeline_mode<synchronous>, transform_indices = @transform_10, window_bounds = array<i64: 1, 128>}, {transform_indices = @transform_11, window_bounds = array<i64: 2, 128>}]} {
    %c0 = arith.constant 0 : index
    %c0_0 = arith.constant 0 : index
    %c0_1 = arith.constant 0 : index
    %0 = vector.load %arg1[%c0, %c0_0, %c0_1] : memref<2x32x128xbf16, #tpu.memory_space<vmem>>, vector<2x32x128xbf16>
    %1 = vector.extract_strided_slice %0 {offsets = [0, 0, 0], sizes = [2, 28, 128], strides = [1, 1, 1]} : vector<2x32x128xbf16> to vector<2x28x128xbf16>
    %2 = vector.extract_strided_slice %0 {offsets = [0, 1, 0], sizes = [2, 28, 128], strides = [1, 1, 1]} : vector<2x32x128xbf16> to vector<2x28x128xbf16>
    %3 = vector.extract_strided_slice %0 {offsets = [0, 2, 0], sizes = [2, 28, 128], strides = [1, 1, 1]} : vector<2x32x128xbf16> to vector<2x28x128xbf16>
    %4 = vector.extract_strided_slice %0 {offsets = [0, 3, 0], sizes = [2, 28, 128], strides = [1, 1, 1]} : vector<2x32x128xbf16> to vector<2x28x128xbf16>
    %5 = vector.extract_strided_slice %0 {offsets = [0, 4, 0], sizes = [2, 28, 128], strides = [1, 1, 1]} : vector<2x32x128xbf16> to vector<2x28x128xbf16>
    %6 = tpu.concatenate %1, %2, %3, %4, %5 in 2 : vector<2x28x128xbf16>, vector<2x28x128xbf16>, vector<2x28x128xbf16>, vector<2x28x128xbf16>, vector<2x28x128xbf16> -> vector<2x28x640xbf16>
    %7 = vector.shape_cast %6 : vector<2x28x640xbf16> to vector<56x640xbf16>
    %c0_2 = arith.constant 0 : index
    %c0_3 = arith.constant 0 : index
    %8 = vector.load %arg2[%c0_2, %c0_3] : memref<640x256xbf16, #tpu.memory_space<vmem>>, vector<640x256xbf16>
    %cst = arith.constant dense<0.000000e+00> : vector<56x256xf32>
    %9 = tpu.matmul %7, %8, %cst {dimension_numbers = #tpu.dot_dimension_numbers<[1], [0], [0], [1], [0, 0, 1, 1], [], []>} : vector<56x640xbf16>, vector<640x256xbf16>, vector<56x256xf32> -> vector<56x256xf32>
    %c0_4 = arith.constant 0 : index
    %c0_5 = arith.constant 0 : index
    %10 = vector.load %arg3[%c0_4, %c0_5] : memref<1x256xf32, #tpu.memory_space<vmem>>, vector<1x256xf32>
    %11 = vector.broadcast %10 : vector<1x256xf32> to vector<56x256xf32>
    %12 = arith.addf %9, %11 : vector<56x256xf32>
    %cst_6 = arith.constant 0.000000e+00 : f32
    %13 = vector.broadcast %cst_6 : f32 to vector<56x256xf32>
    %14 = arith.maximumf %12, %13 : vector<56x256xf32>
    %15 = vector.extract_strided_slice %14 {offsets = [0, 0], sizes = [56, 128], strides = [1, 1]} : vector<56x256xf32> to vector<56x128xf32>
    %16 = vector.extract_strided_slice %14 {offsets = [0, 128], sizes = [56, 128], strides = [1, 1]} : vector<56x256xf32> to vector<56x128xf32>
    %17 = arith.maximumf %15, %16 : vector<56x128xf32>
    %18 = vector.shape_cast %17 : vector<56x128xf32> to vector<2x14x2x128xf32>
    %19 = vector.extract_strided_slice %18 {offsets = [0, 0, 0, 0], sizes = [2, 14, 1, 128], strides = [1, 1, 1, 1]} : vector<2x14x2x128xf32> to vector<2x14x1x128xf32>
    %20 = vector.shape_cast %19 : vector<2x14x1x128xf32> to vector<2x14x128xf32>
    %21 = vector.extract_strided_slice %18 {offsets = [0, 0, 1, 0], sizes = [2, 14, 1, 128], strides = [1, 1, 1, 1]} : vector<2x14x2x128xf32> to vector<2x14x1x128xf32>
    %22 = vector.shape_cast %21 : vector<2x14x1x128xf32> to vector<2x14x128xf32>
    %23 = arith.maximumf %20, %22 : vector<2x14x128xf32>
    %24 = arith.truncf %23 : vector<2x14x128xf32> to vector<2x14x128xbf16>
    %25 = vector.extract_strided_slice %24 {offsets = [0, 0, 0], sizes = [2, 10, 128], strides = [1, 1, 1]} : vector<2x14x128xbf16> to vector<2x10x128xbf16>
    %26 = vector.extract_strided_slice %24 {offsets = [0, 1, 0], sizes = [2, 10, 128], strides = [1, 1, 1]} : vector<2x14x128xbf16> to vector<2x10x128xbf16>
    %27 = vector.extract_strided_slice %24 {offsets = [0, 2, 0], sizes = [2, 10, 128], strides = [1, 1, 1]} : vector<2x14x128xbf16> to vector<2x10x128xbf16>
    %28 = vector.extract_strided_slice %24 {offsets = [0, 3, 0], sizes = [2, 10, 128], strides = [1, 1, 1]} : vector<2x14x128xbf16> to vector<2x10x128xbf16>
    %29 = vector.extract_strided_slice %24 {offsets = [0, 4, 0], sizes = [2, 10, 128], strides = [1, 1, 1]} : vector<2x14x128xbf16> to vector<2x10x128xbf16>
    %30 = tpu.concatenate %25, %26, %27, %28, %29 in 2 : vector<2x10x128xbf16>, vector<2x10x128xbf16>, vector<2x10x128xbf16>, vector<2x10x128xbf16>, vector<2x10x128xbf16> -> vector<2x10x640xbf16>
    %31 = vector.shape_cast %30 : vector<2x10x640xbf16> to vector<20x640xbf16>
    %c0_7 = arith.constant 0 : index
    %c0_8 = arith.constant 0 : index
    %32 = vector.load %arg4[%c0_7, %c0_8] : memref<640x256xbf16, #tpu.memory_space<vmem>>, vector<640x256xbf16>
    %cst_9 = arith.constant dense<0.000000e+00> : vector<20x256xf32>
    %33 = tpu.matmul %31, %32, %cst_9 {dimension_numbers = #tpu.dot_dimension_numbers<[1], [0], [0], [1], [0, 0, 1, 1], [], []>} : vector<20x640xbf16>, vector<640x256xbf16>, vector<20x256xf32> -> vector<20x256xf32>
    %c0_10 = arith.constant 0 : index
    %c0_11 = arith.constant 0 : index
    %34 = vector.load %arg5[%c0_10, %c0_11] : memref<1x256xf32, #tpu.memory_space<vmem>>, vector<1x256xf32>
    %35 = vector.broadcast %34 : vector<1x256xf32> to vector<20x256xf32>
    %36 = arith.addf %33, %35 : vector<20x256xf32>
    %cst_12 = arith.constant 0.000000e+00 : f32
    %37 = vector.broadcast %cst_12 : f32 to vector<20x256xf32>
    %38 = arith.maximumf %36, %37 : vector<20x256xf32>
    %39 = vector.extract_strided_slice %38 {offsets = [0, 0], sizes = [20, 128], strides = [1, 1]} : vector<20x256xf32> to vector<20x128xf32>
    %40 = vector.extract_strided_slice %38 {offsets = [0, 128], sizes = [20, 128], strides = [1, 1]} : vector<20x256xf32> to vector<20x128xf32>
    %41 = arith.maximumf %39, %40 : vector<20x128xf32>
    %42 = vector.shape_cast %41 : vector<20x128xf32> to vector<2x5x2x128xf32>
    %43 = vector.extract_strided_slice %42 {offsets = [0, 0, 0, 0], sizes = [2, 5, 1, 128], strides = [1, 1, 1, 1]} : vector<2x5x2x128xf32> to vector<2x5x1x128xf32>
    %44 = vector.shape_cast %43 : vector<2x5x1x128xf32> to vector<2x5x128xf32>
    %45 = vector.extract_strided_slice %42 {offsets = [0, 0, 1, 0], sizes = [2, 5, 1, 128], strides = [1, 1, 1, 1]} : vector<2x5x2x128xf32> to vector<2x5x1x128xf32>
    %46 = vector.shape_cast %45 : vector<2x5x1x128xf32> to vector<2x5x128xf32>
    %47 = arith.maximumf %44, %46 : vector<2x5x128xf32>
    %48 = vector.shape_cast %47 : vector<2x5x128xf32> to vector<2x640xf32>
    %49 = arith.truncf %48 : vector<2x640xf32> to vector<2x640xbf16>
    %c0_13 = arith.constant 0 : index
    %c0_14 = arith.constant 0 : index
    %50 = vector.load %arg6[%c0_13, %c0_14] : memref<640x120xbf16, #tpu.memory_space<vmem>>, vector<640x120xbf16>
    %cst_15 = arith.constant dense<0.000000e+00> : vector<2x120xf32>
    %51 = tpu.matmul %49, %50, %cst_15 {dimension_numbers = #tpu.dot_dimension_numbers<[1], [0], [0], [1], [0, 0, 1, 1], [], []>} : vector<2x640xbf16>, vector<640x120xbf16>, vector<2x120xf32> -> vector<2x120xf32>
    %c0_16 = arith.constant 0 : index
    %c0_17 = arith.constant 0 : index
    %52 = vector.load %arg7[%c0_16, %c0_17] : memref<1x120xf32, #tpu.memory_space<vmem>>, vector<1x120xf32>
    %53 = vector.broadcast %52 : vector<1x120xf32> to vector<2x120xf32>
    %54 = arith.addf %51, %53 : vector<2x120xf32>
    %cst_18 = arith.constant 0.000000e+00 : f32
    %55 = vector.broadcast %cst_18 : f32 to vector<2x120xf32>
    %56 = arith.maximumf %54, %55 : vector<2x120xf32>
    %57 = arith.truncf %56 : vector<2x120xf32> to vector<2x120xbf16>
    %c0_19 = arith.constant 0 : index
    %c0_20 = arith.constant 0 : index
    %58 = vector.load %arg8[%c0_19, %c0_20] : memref<120x84xbf16, #tpu.memory_space<vmem>>, vector<120x84xbf16>
    %cst_21 = arith.constant dense<0.000000e+00> : vector<2x84xf32>
    %59 = tpu.matmul %57, %58, %cst_21 {dimension_numbers = #tpu.dot_dimension_numbers<[1], [0], [0], [1], [0, 0, 1, 1], [], []>} : vector<2x120xbf16>, vector<120x84xbf16>, vector<2x84xf32> -> vector<2x84xf32>
    %c0_22 = arith.constant 0 : index
    %c0_23 = arith.constant 0 : index
    %60 = vector.load %arg9[%c0_22, %c0_23] : memref<1x84xf32, #tpu.memory_space<vmem>>, vector<1x84xf32>
    %61 = vector.broadcast %60 : vector<1x84xf32> to vector<2x84xf32>
    %62 = arith.addf %59, %61 : vector<2x84xf32>
    %cst_24 = arith.constant 0.000000e+00 : f32
    %63 = vector.broadcast %cst_24 : f32 to vector<2x84xf32>
    %64 = arith.maximumf %62, %63 : vector<2x84xf32>
    %65 = arith.truncf %64 : vector<2x84xf32> to vector<2x84xbf16>
    %c0_25 = arith.constant 0 : index
    %c0_26 = arith.constant 0 : index
    %66 = vector.load %arg10[%c0_25, %c0_26] : memref<84x128xbf16, #tpu.memory_space<vmem>>, vector<84x128xbf16>
    %cst_27 = arith.constant dense<0.000000e+00> : vector<2x128xf32>
    %67 = tpu.matmul %65, %66, %cst_27 {dimension_numbers = #tpu.dot_dimension_numbers<[1], [0], [0], [1], [0, 0, 1, 1], [], []>} : vector<2x84xbf16>, vector<84x128xbf16>, vector<2x128xf32> -> vector<2x128xf32>
    %c0_28 = arith.constant 0 : index
    %c0_29 = arith.constant 0 : index
    %68 = vector.load %arg11[%c0_28, %c0_29] : memref<1x128xf32, #tpu.memory_space<vmem>>, vector<1x128xf32>
    %69 = vector.broadcast %68 : vector<1x128xf32> to vector<2x128xf32>
    %70 = arith.addf %67, %69 : vector<2x128xf32>
    %c0_30 = arith.constant 0 : index
    %c0_31 = arith.constant 0 : index
    %71 = vector.load %arg12[%c0_30, %c0_31] : memref<2x128xf32, #tpu.memory_space<vmem>>, vector<2x128xf32>
    tpu.vector_store %arg12[%c0_30, %c0_31], %70 {strides = array<i32>} : memref<2x128xf32, #tpu.memory_space<vmem>>, vector<2x128xf32>,
    return
  }
  func.func @transform_0(%arg0: i32) -> (i32, i32, i32) {
    %c0_i32 = arith.constant 0 : i32
    %c0_i32_0 = arith.constant 0 : i32
    %c0_i32_1 = arith.constant 0 : i32
    return %arg0, %c0_i32, %c0_i32_0 : i32, i32, i32
  }
  func.func @transform_1(%arg0: i32) -> (i32, i32) {
    %c0_i32 = arith.constant 0 : i32
    %c0_i32_0 = arith.constant 0 : i32
    %c0_i32_1 = arith.constant 0 : i32
    return %c0_i32, %c0_i32_0 : i32, i32
  }
  func.func @transform_2(%arg0: i32) -> (i32, i32) {
    %c0_i32 = arith.constant 0 : i32
    %c0_i32_0 = arith.constant 0 : i32
    %c0_i32_1 = arith.constant 0 : i32
    return %c0_i32, %c0_i32_0 : i32, i32
  }
  func.func @transform_3(%arg0: i32) -> (i32, i32) {
    %c0_i32 = arith.constant 0 : i32
    %c0_i32_0 = arith.constant 0 : i32
    %c0_i32_1 = arith.constant 0 : i32
    return %c0_i32, %c0_i32_0 : i32, i32
  }
  func.func @transform_4(%arg0: i32) -> (i32, i32) {
    %c0_i32 = arith.constant 0 : i32
    %c0_i32_0 = arith.constant 0 : i32
    %c0_i32_1 = arith.constant 0 : i32
    return %c0_i32, %c0_i32_0 : i32, i32
  }
  func.func @transform_5(%arg0: i32) -> (i32, i32) {
    %c0_i32 = arith.constant 0 : i32
    %c0_i32_0 = arith.constant 0 : i32
    %c0_i32_1 = arith.constant 0 : i32
    return %c0_i32, %c0_i32_0 : i32, i32
  }
  func.func @transform_6(%arg0: i32) -> (i32, i32) {
    %c0_i32 = arith.constant 0 : i32
    %c0_i32_0 = arith.constant 0 : i32
    %c0_i32_1 = arith.constant 0 : i32
    return %c0_i32, %c0_i32_0 : i32, i32
  }
  func.func @transform_7(%arg0: i32) -> (i32, i32) {
    %c0_i32 = arith.constant 0 : i32
    %c0_i32_0 = arith.constant 0 : i32
    %c0_i32_1 = arith.constant 0 : i32
    return %c0_i32, %c0_i32_0 : i32, i32
  }
  func.func @transform_8(%arg0: i32) -> (i32, i32) {
    %c0_i32 = arith.constant 0 : i32
    %c0_i32_0 = arith.constant 0 : i32
    %c0_i32_1 = arith.constant 0 : i32
    return %c0_i32, %c0_i32_0 : i32, i32
  }
  func.func @transform_9(%arg0: i32) -> (i32, i32) {
    %c0_i32 = arith.constant 0 : i32
    %c0_i32_0 = arith.constant 0 : i32
    %c0_i32_1 = arith.constant 0 : i32
    return %c0_i32, %c0_i32_0 : i32, i32
  }
  func.func @transform_10(%arg0: i32) -> (i32, i32) {
    %c0_i32 = arith.constant 0 : i32
    %c0_i32_0 = arith.constant 0 : i32
    %c0_i32_1 = arith.constant 0 : i32
    return %c0_i32, %c0_i32_0 : i32, i32
  }
  func.func @transform_11(%arg0: i32) -> (i32, i32) {
    %c0_i32 = arith.constant 0 : i32
    %c0_i32_0 = arith.constant 0 : i32
    return %arg0, %c0_i32 : i32, i32
  }
}

</mosaic_0001>

<llo_original>
// kernel: cnn_cifar_forward.1
$region0: #{cnn_cifar_forward.1}
  #allocation0 [shape = 'u32[]', space=smem, size = 0x4, offset = 0x4, fixed_abs, tag = 'smem constant byte address 0x4 - core index']
  #allocation1 [shape = 'u32[72,128]{1,0:T(1,128)}', space=vmem, size = 0x9000, scoped, tag = 'internal scratch']
  %s0 = inlined_call_operand.vmem [shape: bf16[2,32,128], index: 0, kind: input, shape index: {}]
  %s1 = inlined_call_operand.vmem [shape: bf16[640,256], index: 1, kind: input, shape index: {}]
  %s2 = inlined_call_operand.vmem [shape: f32[1,256], index: 2, kind: input, shape index: {}]
  %s3 = inlined_call_operand.hbm [shape: bf16[640,256], index: 3, kind: input, shape index: {}]
  %s4 = inlined_call_operand.vmem [shape: f32[1,256], index: 4, kind: input, shape index: {}]
  %s5 = inlined_call_operand.vmem [shape: bf16[640,120], index: 5, kind: input, shape index: {}]
  %s6 = inlined_call_operand.vmem [shape: f32[1,120], index: 6, kind: input, shape index: {}]
  %s7 = inlined_call_operand.vmem [shape: bf16[120,84], index: 7, kind: input, shape index: {}]
  %s8 = inlined_call_operand.vmem [shape: f32[1,84], index: 8, kind: input, shape index: {}]
  %s9 = inlined_call_operand.vmem [shape: bf16[84,128], index: 9, kind: input, shape index: {}]
  %s10 = inlined_call_operand.vmem [shape: f32[1,128], index: 10, kind: input, shape index: {}]
  %s11 = inlined_call_operand.hbm [shape: f32[2,128], index: 11, kind: output, shape index: {}]
  %s12 = sld [smem:[#allocation0]]
  $region58: #{cnn_cifar_forward.1} parent=0
    _
  %s14 = ssub.s32 1, %s12
  %s15 = scalar_select 0, %s14, %s12
  $region1: #{cnn_cifar_forward.1} parent=0
    #allocation2 [shape = 'u8[327680]{0}', space=vmem, size = 0x50000, scoped, tag = 'input window, operand 3, single buffered']
    #allocation3 [shape = 's32[1]{0}', space=sflag, size = 0x4, scoped, tag = 'scoped memory for cnn_cifar_forward.1']
    #allocation4 [shape = 's32[1]{0}', space=sflag, size = 0x4, scoped, tag = 'scoped memory for cnn_cifar_forward.1']
    #allocation5 [shape = 'u8[1024]{0}', space=vmem, size = 0x400, scoped, tag = 'output window, operand 0, single buffered']
    %16 = vsyncpa [#allocation3], 0
    %17 = vsyncpa [#allocation4], 0
    // Predicated region
    $region2: #{cnn_cifar_forward.1} parent=1 // pred_check
      _
    $region3: #{cnn_cifar_forward.1} parent=1 // pred_check_branch
      %19 = sbr.rel (0) target = $region5
    $region4: #{cnn_cifar_forward.1} parent=1 // pred_region
      _
    $region5: #{cnn_cifar_forward.1} parent=1 // pred_fallthru
      _
    // Predicated region
    $region6: #{cnn_cifar_forward.1} parent=1 // pred_check
      _
    $region7: #{cnn_cifar_forward.1} parent=1 // pred_check_branch
      %21 = sbr.rel (0) target = $region9
    $region8: #{cnn_cifar_forward.1} parent=1 // pred_region
      _
    $region9: #{cnn_cifar_forward.1} parent=1 // pred_fallthru
      _
    // Predicated region
    $region10: #{cnn_cifar_forward.1} parent=1 // pred_check
      _
    $region11: #{cnn_cifar_forward.1} parent=1 // pred_check_branch
      %23 = sbr.rel (0) target = $region13
    $region12: #{cnn_cifar_forward.1} parent=1 // pred_region
      _
    $region13: #{cnn_cifar_forward.1} parent=1 // pred_fallthru
      _
    // Predicated region
    $region14: #{cnn_cifar_forward.1} parent=1 // pred_check
      _
    $region15: #{cnn_cifar_forward.1} parent=1 // pred_check_branch
      %25 = sbr.rel (0) target = $region17
    $region16: #{cnn_cifar_forward.1} parent=1 // pred_region
      %27 = vsyncadd [#allocation3], 0
      %s28 = sshll.u32 %s3, 4
      %s29 = int_to_ptr.hbm [resolvable:$true] %s28
      %s30 = sshll.u32 [#allocation2], 4
      %s31 = int_to_ptr.vmem [resolvable:$true] %s30
      %36 = dma.hbm_to_vmem [thread:$0]  %s29, 10240, %s31, [#allocation3], 128, 128, 8
    $region17: #{cnn_cifar_forward.1} parent=1 // pred_fallthru
      _
    // Predicated region
    $region18: #{cnn_cifar_forward.1} parent=1 // pred_check
      _
    $region19: #{cnn_cifar_forward.1} parent=1 // pred_check_branch
      %38 = sbr.rel (0) target = $region21
    $region20: #{cnn_cifar_forward.1} parent=1 // pred_region
      _
    $region21: #{cnn_cifar_forward.1} parent=1 // pred_fallthru
      _
    // Predicated region
    $region22: #{cnn_cifar_forward.1} parent=1 // pred_check
      _
    $region23: #{cnn_cifar_forward.1} parent=1 // pred_check_branch
      %40 = sbr.rel (0) target = $region25
    $region24: #{cnn_cifar_forward.1} parent=1 // pred_region
      _
    $region25: #{cnn_cifar_forward.1} parent=1 // pred_fallthru
      _
    // Predicated region
    $region26: #{cnn_cifar_forward.1} parent=1 // pred_check
      _
    $region27: #{cnn_cifar_forward.1} parent=1 // pred_check_branch
      %42 = sbr.rel (0) target = $region29
    $region28: #{cnn_cifar_forward.1} parent=1 // pred_region
      _
    $region29: #{cnn_cifar_forward.1} parent=1 // pred_fallthru
      _
    // Predicated region
    $region30: #{cnn_cifar_forward.1} parent=1 // pred_check
      _
    $region31: #{cnn_cifar_forward.1} parent=1 // pred_check_branch
      %44 = sbr.rel (0) target = $region33
    $region32: #{cnn_cifar_forward.1} parent=1 // pred_region
      _
    $region33: #{cnn_cifar_forward.1} parent=1 // pred_fallthru
      _
    // Predicated region
    $region34: #{cnn_cifar_forward.1} parent=1 // pred_check
      _
    $region35: #{cnn_cifar_forward.1} parent=1 // pred_check_branch
      %46 = sbr.rel (0) target = $region37
    $region36: #{cnn_cifar_forward.1} parent=1 // pred_region
      _
    $region37: #{cnn_cifar_forward.1} parent=1 // pred_fallthru
      _
    // Predicated region
    $region38: #{cnn_cifar_forward.1} parent=1 // pred_check
      _
    $region39: #{cnn_cifar_forward.1} parent=1 // pred_check_branch
      %48 = sbr.rel (0) target = $region41
    $region40: #{cnn_cifar_forward.1} parent=1 // pred_region
      _
    $region41: #{cnn_cifar_forward.1} parent=1 // pred_fallthru
      _
    // Predicated region
    $region42: #{cnn_cifar_forward.1} parent=1 // pred_check
      _
    $region43: #{cnn_cifar_forward.1} parent=1 // pred_check_branch
      %50 = sbr.rel (0) target = $region45
    $region44: #{cnn_cifar_forward.1} parent=1 // pred_region
      _
    $region45: #{cnn_cifar_forward.1} parent=1 // pred_fallthru
      _
    // Predicated region
    $region46: #{cnn_cifar_forward.1} parent=1 // pred_check
      _
    $region47: #{cnn_cifar_forward.1} parent=1 // pred_check_branch
      %52 = sbr.rel (0) target = $region49
    $region48: #{cnn_cifar_forward.1} parent=1 // pred_region
      %54 = dma.done [#allocation3], 10240
    $region49: #{cnn_cifar_forward.1} parent=1 // pred_fallthru
      _
    %v56 = vld [vmem:[%s0] sm:$0xf]
    %v57 = vld [vmem:[%s0 + $0x4] sm:$0xf]
    %v58 = vld [vmem:[%s0 + $0x8] sm:$0xf]
    %v59 = vld [vmem:[%s0 + $0xc] sm:$0xf]
    %v60 = vld [vmem:[%s0 + $0x10] sm:$0xf]
    %v61 = vld [vmem:[%s0 + $0x14] sm:$0xf]
    %v62 = vld [vmem:[%s0 + $0x18] sm:$0xf]
    %v63 = vld [vmem:[%s0 + $0x1c] sm:$0xf]
    %v72 = vunpack.c.l.b16 %v56
    %v73 = vunpack.c.l.b16 %v57
    %v74 = vunpack.c.l.b16 %v58
    %v75 = vunpack.c.l.b16 %v59
    %v76 = vunpack.c.l.b16 %v60
    %v77 = vunpack.c.l.b16 %v61
    %v78 = vunpack.c.l.b16 %v62
    %v79 = vunpack.c.l.b16 %v63
    %v80 = vpack.c.b16 %v73, %v72
    %v81 = vpack.c.b16 %v75, %v74
    %v82 = vpack.c.b16 %v77, %v76
    %v83 = vpack.c.b16 %v79, %v78
    %vm84 = vsmask.f32 7424
    %v86 = vshrl.u32 %v80, 16
    %v88 = vshll.u32 %v80, 16
    %v90 = vrot.slane %v88, 1
    %v91 = vor.u32 %v86, %v90
    %v93 = vshll.u32 %v81, 16
    %v95 = vrot.slane %v93, 1
    %v96 = vsel %vm84, %v91, %v95
    %v97 = vshrl.u32 %v81, 16
    %v99 = vor.u32 %v97, %v95
    %v101 = vshrl.u32 %v82, 16
    %v103 = vshll.u32 %v82, 16
    %v105 = vrot.slane %v103, 1
    %v106 = vor.u32 %v101, %v105
    %v108 = vshll.u32 %v83, 16
    %v110 = vrot.slane %v108, 1
    %v111 = vsel %vm84, %v106, %v110
    %v112 = vshrl.u32 %v83, 16
    %v114 = vor.u32 %v112, %v110
    %vm115 = vcmask 1046528
    %v116 = vrot.slane %v80, 1
    %v117 = vrot.slane %v81, 1
    %v118 = vsel %vm115, %v116, %v117
    %v119 = vrot.slane %v82, 1
    %v120 = vrot.slane %v83, 1
    %v121 = vsel %vm115, %v119, %v120
    %vm122 = vsmask.f32 6400
    %v123 = vrot.slane %v86, 1
    %v124 = vrot.slane %v88, 2
    %v125 = vor.u32 %v123, %v124
    %v126 = vrot.slane %v97, 1
    %v127 = vrot.slane %v93, 2
    %v128 = vor.u32 %v126, %v127
    %v129 = vsel %vm122, %v125, %v128
    %v130 = vrot.slane %v101, 1
    %v131 = vrot.slane %v103, 2
    %v132 = vor.u32 %v130, %v131
    %v133 = vrot.slane %v112, 1
    %v134 = vrot.slane %v108, 2
    %v135 = vor.u32 %v133, %v134
    %v136 = vsel %vm122, %v132, %v135
    %vm137 = vcmask 1045504
    %v138 = vrot.slane %v80, 2
    %v139 = vrot.slane %v81, 2
    %v140 = vsel %vm137, %v138, %v139
    %v141 = vrot.slane %v82, 2
    %v142 = vrot.slane %v83, 2
    %v143 = vsel %vm137, %v141, %v142
    %v144 = vrot.slane %v96, 6
    %v145 = vrot.slane %v118, 4
    %v146 = vrot.slane %v129, 2
    %v147 = vrot.slane %v99, 6
    %v148 = vrot.slane %v117, 4
    %v149 = vrot.slane %v128, 2
    %v150 = vrot.slane %v111, 6
    %v151 = vrot.slane %v121, 4
    %v152 = vrot.slane %v136, 2
    %v153 = vrot.slane %v114, 6
    %v154 = vrot.slane %v120, 4
    %v155 = vrot.slane %v135, 2
    %vm156 = vcmask 1041408
    %v158 = vsel %vm156, %v80, %v144
    %vm159 = vcmask 1045508
    %v162 = vsel %vm159, %v145, %v146
    %vm163 = vcmask 1043456
    %v164 = vsel %vm163, %v158, %v162
    %vm165 = vcmask 1043458
    %v166 = vsel %vm165, %v80, %v144
    %vm167 = vcmask 1045504
    %v168 = vsel %vm167, %v146, %v145
    %vm169 = vcmask 1045506
    %v170 = vsel %vm169, %v166, %v168
    %v172 = vrot.slane %v170, 2
    %v173 = vrot.slane %v140, 2
    %v174 = vsel %vm159, %v80, %v144
    %v175 = vsel %vm156, %v145, %v146
    %v176 = vsel %vm163, %v175, %v174
    %v178 = vrot.slane %v176, 4
    %v179 = vrot.slane %v140, 4
    %v180 = vsel %vm167, %v144, %v80
    %v181 = vsel %vm165, %v145, %v146
    %v182 = vsel %vm169, %v181, %v180
    %v184 = vrot.slane %v182, 6
    %v185 = vrot.slane %v140, 6
    %v187 = vsel %vm156, %v81, %v147
    %v190 = vsel %vm159, %v148, %v149
    %v191 = vsel %vm163, %v187, %v190
    %v192 = vsel %vm165, %v81, %v147
    %v193 = vsel %vm167, %v149, %v148
    %v194 = vsel %vm169, %v192, %v193
    %v196 = vrot.slane %v194, 2
    %v197 = vrot.slane %v139, 2
    %v198 = vsel %vm159, %v81, %v147
    %v199 = vsel %vm156, %v148, %v149
    %v200 = vsel %vm163, %v199, %v198
    %v202 = vrot.slane %v200, 4
    %v203 = vrot.slane %v139, 4
    %v205 = vsel %vm156, %v82, %v150
    %v208 = vsel %vm159, %v151, %v152
    %v209 = vsel %vm163, %v205, %v208
    %v210 = vsel %vm165, %v82, %v150
    %v211 = vsel %vm167, %v152, %v151
    %v212 = vsel %vm169, %v210, %v211
    %v214 = vrot.slane %v212, 2
    %v215 = vrot.slane %v143, 2
    %v216 = vsel %vm159, %v82, %v150
    %v217 = vsel %vm156, %v151, %v152
    %v218 = vsel %vm163, %v217, %v216
    %v220 = vrot.slane %v218, 4
    %v221 = vrot.slane %v143, 4
    %v222 = vsel %vm167, %v150, %v82
    %v223 = vsel %vm165, %v151, %v152
    %v224 = vsel %vm169, %v223, %v222
    %v226 = vrot.slane %v224, 6
    %v227 = vrot.slane %v143, 6
    %v229 = vsel %vm156, %v83, %v153
    %v232 = vsel %vm159, %v154, %v155
    %v233 = vsel %vm163, %v229, %v232
    %v234 = vsel %vm165, %v83, %v153
    %v235 = vsel %vm167, %v155, %v154
    %v236 = vsel %vm169, %v234, %v235
    %v238 = vrot.slane %v236, 2
    %v239 = vrot.slane %v142, 2
    %v240 = vsel %vm159, %v83, %v153
    %v241 = vsel %vm156, %v154, %v155
    %v242 = vsel %vm163, %v241, %v240
    %v244 = vrot.slane %v242, 4
    %v245 = vrot.slane %v142, 4
    %v246 = vld [vmem:[%s1] sm:$0xff]
    %v247 = vld [vmem:[%s1 + $0x8] sm:$0xff]
    %v248 = vld [vmem:[%s1 + $0x10] sm:$0xff]
    %v249 = vld [vmem:[%s1 + $0x18] sm:$0xff]
    %v250 = vld [vmem:[%s1 + $0x20] sm:$0xff]
    %v251 = vld [vmem:[%s1 + $0x28] sm:$0xff]
    %v252 = vld [vmem:[%s1 + $0x30] sm:$0xff]
    %v253 = vld [vmem:[%s1 + $0x38] sm:$0xff]
    %v254 = vld [vmem:[%s1 + $0x40] sm:$0xff]
    %v255 = vld [vmem:[%s1 + $0x48] sm:$0xff]
    %v256 = vld [vmem:[%s1 + $0x50] sm:$0xff]
    %v257 = vld [vmem:[%s1 + $0x58] sm:$0xff]
    %v258 = vld [vmem:[%s1 + $0x60] sm:$0xff]
    %v259 = vld [vmem:[%s1 + $0x68] sm:$0xff]
    %v260 = vld [vmem:[%s1 + $0x70] sm:$0xff]
    %v261 = vld [vmem:[%s1 + $0x78] sm:$0xff]
    %v262 = vld [vmem:[%s1 + $0x80] sm:$0xff]
    %v263 = vld [vmem:[%s1 + $0x88] sm:$0xff]
    %v264 = vld [vmem:[%s1 + $0x90] sm:$0xff]
    %v265 = vld [vmem:[%s1 + $0x98] sm:$0xff]
    %v266 = vld [vmem:[%s1 + $0xa0] sm:$0xff]
    %v267 = vld [vmem:[%s1 + $0xa8] sm:$0xff]
    %v268 = vld [vmem:[%s1 + $0xb0] sm:$0xff]
    %v269 = vld [vmem:[%s1 + $0xb8] sm:$0xff]
    %v270 = vld [vmem:[%s1 + $0xc0] sm:$0xff]
    %v271 = vld [vmem:[%s1 + $0xc8] sm:$0xff]
    %v272 = vld [vmem:[%s1 + $0xd0] sm:$0xff]
    %v273 = vld [vmem:[%s1 + $0xd8] sm:$0xff]
    %v274 = vld [vmem:[%s1 + $0xe0] sm:$0xff]
    %v275 = vld [vmem:[%s1 + $0xe8] sm:$0xff]
    %v276 = vld [vmem:[%s1 + $0xf0] sm:$0xff]
    %v277 = vld [vmem:[%s1 + $0xf8] sm:$0xff]
    %v278 = vld [vmem:[%s1 + $0x100] sm:$0xff]
    %v279 = vld [vmem:[%s1 + $0x108] sm:$0xff]
    %v280 = vld [vmem:[%s1 + $0x110] sm:$0xff]
    %v281 = vld [vmem:[%s1 + $0x118] sm:$0xff]
    %v282 = vld [vmem:[%s1 + $0x120] sm:$0xff]
    %v283 = vld [vmem:[%s1 + $0x128] sm:$0xff]
    %v284 = vld [vmem:[%s1 + $0x130] sm:$0xff]
    %v285 = vld [vmem:[%s1 + $0x138] sm:$0xff]
    %v286 = vld [vmem:[%s1 + $0x140] sm:$0xff]
    %v287 = vld [vmem:[%s1 + $0x148] sm:$0xff]
    %v288 = vld [vmem:[%s1 + $0x150] sm:$0xff]
    %v289 = vld [vmem:[%s1 + $0x158] sm:$0xff]
    %v290 = vld [vmem:[%s1 + $0x160] sm:$0xff]
    %v291 = vld [vmem:[%s1 + $0x168] sm:$0xff]
    %v292 = vld [vmem:[%s1 + $0x170] sm:$0xff]
    %v293 = vld [vmem:[%s1 + $0x178] sm:$0xff]
    %v294 = vld [vmem:[%s1 + $0x180] sm:$0xff]
    %v295 = vld [vmem:[%s1 + $0x188] sm:$0xff]
    %v296 = vld [vmem:[%s1 + $0x190] sm:$0xff]
    %v297 = vld [vmem:[%s1 + $0x198] sm:$0xff]
    %v298 = vld [vmem:[%s1 + $0x1a0] sm:$0xff]
    %v299 = vld [vmem:[%s1 + $0x1a8] sm:$0xff]
    %v300 = vld [vmem:[%s1 + $0x1b0] sm:$0xff]
    %v301 = vld [vmem:[%s1 + $0x1b8] sm:$0xff]
    %v302 = vld [vmem:[%s1 + $0x1c0] sm:$0xff]
    %v303 = vld [vmem:[%s1 + $0x1c8] sm:$0xff]
    %v304 = vld [vmem:[%s1 + $0x1d0] sm:$0xff]
    %v305 = vld [vmem:[%s1 + $0x1d8] sm:$0xff]
    %v306 = vld [vmem:[%s1 + $0x1e0] sm:$0xff]
    %v307 = vld [vmem:[%s1 + $0x1e8] sm:$0xff]
    %v308 = vld [vmem:[%s1 + $0x1f0] sm:$0xff]
    %v309 = vld [vmem:[%s1 + $0x1f8] sm:$0xff]
    %v310 = vld [vmem:[%s1 + $0x200] sm:$0xff]
    %v311 = vld [vmem:[%s1 + $0x208] sm:$0xff]
    %v312 = vld [vmem:[%s1 + $0x210] sm:$0xff]
    %v313 = vld [vmem:[%s1 + $0x218] sm:$0xff]
    %v314 = vld [vmem:[%s1 + $0x220] sm:$0xff]
    %v315 = vld [vmem:[%s1 + $0x228] sm:$0xff]
    %v316 = vld [vmem:[%s1 + $0x230] sm:$0xff]
    %v317 = vld [vmem:[%s1 + $0x238] sm:$0xff]
    %v318 = vld [vmem:[%s1 + $0x240] sm:$0xff]
    %v319 = vld [vmem:[%s1 + $0x248] sm:$0xff]
    %v320 = vld [vmem:[%s1 + $0x250] sm:$0xff]
    %v321 = vld [vmem:[%s1 + $0x258] sm:$0xff]
    %v322 = vld [vmem:[%s1 + $0x260] sm:$0xff]
    %v323 = vld [vmem:[%s1 + $0x268] sm:$0xff]
    %v324 = vld [vmem:[%s1 + $0x270] sm:$0xff]
    %v325 = vld [vmem:[%s1 + $0x278] sm:$0xff]
    %v326 = vld [vmem:[%s2] sm:$0x3]
    %v328 = vperm.slane %v326, 0
    %v329 = vperm.slane %v326, 1
    %332 = vst [vmem:[#allocation1] ss:$4 sm:$0xff] %v164
    %s334 = scalar_lea.vmem [#allocation1], 1
    %335 = vst [vmem:[%s334] ss:$4 sm:$0xff] %v172
    %s337 = scalar_lea.vmem [#allocation1], 2
    %338 = vst [vmem:[%s337] ss:$4 sm:$0xff] %v178
    %s340 = scalar_lea.vmem [#allocation1], 3
    %341 = vst [vmem:[%s340] ss:$4 sm:$0xff] %v184
    %s343 = scalar_lea.vmem [#allocation1], 32
    %344 = vst [vmem:[%s343] ss:$4 sm:$0xff] %v140
    %s346 = scalar_lea.vmem [#allocation1], 33
    %347 = vst [vmem:[%s346] ss:$4 sm:$0xff] %v173
    %s349 = scalar_lea.vmem [#allocation1], 34
    %350 = vst [vmem:[%s349] ss:$4 sm:$0xff] %v179
    %s352 = scalar_lea.vmem [#allocation1], 35
    %353 = vst [vmem:[%s352] ss:$4 sm:$0xff] %v185
    %v354 = vld.sshfl [vmem:[#allocation1] sm:$0xff pattern:$0x73625140]
    %v355 = vld.sshfl [vmem:[#allocation1 + $0x8] sm:$0xff pattern:$0x73625140]
    %v356 = vld.sshfl [vmem:[#allocation1 + $0x10] sm:$0xff pattern:$0x73625140]
    %v357 = vld.sshfl [vmem:[#allocation1 + $0x18] sm:$0xff pattern:$0x73625140]
    %v358 = vld.sshfl [vmem:[#allocation1 + $0x20] sm:$0xff pattern:$0x73625140]
    %359 = vst [vmem:[#allocation1] ss:$4 sm:$0xff] %v191
    %361 = vst [vmem:[%s334] ss:$4 sm:$0xff] %v196
    %363 = vst [vmem:[%s337] ss:$4 sm:$0xff] %v202
    %364 = vst [vmem:[%s340] ss:$4 sm:$0xff] %v209
    %366 = vst [vmem:[%s343] ss:$4 sm:$0xff] %v139
    %368 = vst [vmem:[%s346] ss:$4 sm:$0xff] %v197
    %370 = vst [vmem:[%s349] ss:$4 sm:$0xff] %v203
    %372 = vst [vmem:[%s352] ss:$4 sm:$0xff] %v143
    %v373 = vld.sshfl [vmem:[#allocation1] sm:$0xff pattern:$0x73625140]
    %v374 = vld.sshfl [vmem:[#allocation1 + $0x8] sm:$0xff pattern:$0x73625140]
    %v375 = vld.sshfl [vmem:[#allocation1 + $0x10] sm:$0xff pattern:$0x73625140]
    %v376 = vld.sshfl [vmem:[#allocation1 + $0x18] sm:$0xff pattern:$0x73625140]
    %v377 = vld.sshfl [vmem:[#allocation1 + $0x20] sm:$0xff pattern:$0x73625140]
    %379 = vst [vmem:[#allocation1] ss:$4 sm:$0xff] %v214
    %381 = vst [vmem:[%s334] ss:$4 sm:$0xff] %v220
    %383 = vst [vmem:[%s337] ss:$4 sm:$0xff] %v226
    %384 = vst [vmem:[%s340] ss:$4 sm:$0xff] %v233
    %386 = vst [vmem:[%s343] ss:$4 sm:$0xff] %v215
    %388 = vst [vmem:[%s346] ss:$4 sm:$0xff] %v221
    %390 = vst [vmem:[%s349] ss:$4 sm:$0xff] %v227
    %392 = vst [vmem:[%s352] ss:$4 sm:$0xff] %v142
    %v393 = vld.sshfl [vmem:[#allocation1] sm:$0xff pattern:$0x73625140]
    %v394 = vld.sshfl [vmem:[#allocation1 + $0x8] sm:$0xff pattern:$0x73625140]
    %v395 = vld.sshfl [vmem:[#allocation1 + $0x10] sm:$0xff pattern:$0x73625140]
    %v396 = vld.sshfl [vmem:[#allocation1 + $0x18] sm:$0xff pattern:$0x73625140]
    %v397 = vld.sshfl [vmem:[#allocation1 + $0x20] sm:$0xff pattern:$0x73625140]
    %399 = vst [vmem:[#allocation1] ss:$4 sm:$0xff] %v238
    %401 = vst [vmem:[%s334] ss:$4 sm:$0xff] %v244
    %403 = vst [vmem:[%s343] ss:$4 sm:$0xff] %v239
    %405 = vst [vmem:[%s346] ss:$4 sm:$0xff] %v245
    %v406 = vld.sshfl [vmem:[#allocation1] sm:$0xff pattern:$0x73625140]
    %v407 = vld.sshfl [vmem:[#allocation1 + $0x8] sm:$0xff pattern:$0x73625140]
    %v408 = vld.sshfl [vmem:[#allocation1 + $0x10] sm:$0xff pattern:$0x73625140]
    %v409 = vld.sshfl [vmem:[#allocation1 + $0x18] sm:$0xff pattern:$0x73625140]
    %v410 = vld.sshfl [vmem:[#allocation1 + $0x20] sm:$0xff pattern:$0x73625140]
    %v511 = vunpack.c.l.b16 %v246
    %v512 = vunpack.c.h.b16 %v246
    %v513 = vunpack.c.l.b16 %v247
    %v514 = vunpack.c.h.b16 %v247
    %v515 = vunpack.c.l.b16 %v248
    %v516 = vunpack.c.h.b16 %v248
    %v517 = vunpack.c.l.b16 %v249
    %v518 = vunpack.c.h.b16 %v249
    %v519 = vunpack.c.l.b16 %v250
    %v520 = vunpack.c.h.b16 %v250
    %v521 = vunpack.c.l.b16 %v251
    %v522 = vunpack.c.h.b16 %v251
    %v523 = vunpack.c.l.b16 %v252
    %v524 = vunpack.c.h.b16 %v252
    %v525 = vunpack.c.l.b16 %v253
    %v526 = vunpack.c.h.b16 %v253
    %v527 = vunpack.c.l.b16 %v254
    %v528 = vunpack.c.h.b16 %v254
    %v529 = vunpack.c.l.b16 %v255
    %v530 = vunpack.c.h.b16 %v255
    %v531 = vunpack.c.l.b16 %v256
    %v532 = vunpack.c.h.b16 %v256
    %v533 = vunpack.c.l.b16 %v257
    %v534 = vunpack.c.h.b16 %v257
    %v535 = vunpack.c.l.b16 %v258
    %v536 = vunpack.c.h.b16 %v258
    %v537 = vunpack.c.l.b16 %v259
    %v538 = vunpack.c.h.b16 %v259
    %v539 = vunpack.c.l.b16 %v260
    %v540 = vunpack.c.h.b16 %v260
    %v541 = vunpack.c.l.b16 %v261
    %v542 = vunpack.c.h.b16 %v261
    %v543 = vunpack.c.l.b16 %v262
    %v544 = vunpack.c.h.b16 %v262
    %v545 = vunpack.c.l.b16 %v263
    %v546 = vunpack.c.h.b16 %v263
    %v547 = vunpack.c.l.b16 %v264
    %v548 = vunpack.c.h.b16 %v264
    %v549 = vunpack.c.l.b16 %v265
    %v550 = vunpack.c.h.b16 %v265
    %v551 = vunpack.c.l.b16 %v266
    %v552 = vunpack.c.h.b16 %v266
    %v553 = vunpack.c.l.b16 %v267
    %v554 = vunpack.c.h.b16 %v267
    %v555 = vunpack.c.l.b16 %v268
    %v556 = vunpack.c.h.b16 %v268
    %v557 = vunpack.c.l.b16 %v269
    %v558 = vunpack.c.h.b16 %v269
    %v559 = vunpack.c.l.b16 %v270
    %v560 = vunpack.c.h.b16 %v270
    %v561 = vunpack.c.l.b16 %v271
    %v562 = vunpack.c.h.b16 %v271
    %v563 = vunpack.c.l.b16 %v272
    %v564 = vunpack.c.h.b16 %v272
    %v565 = vunpack.c.l.b16 %v273
    %v566 = vunpack.c.h.b16 %v273
    %v567 = vunpack.c.l.b16 %v274
    %v568 = vunpack.c.h.b16 %v274
    %v569 = vunpack.c.l.b16 %v275
    %v570 = vunpack.c.h.b16 %v275
    %v571 = vunpack.c.l.b16 %v276
    %v572 = vunpack.c.h.b16 %v276
    %v573 = vunpack.c.l.b16 %v277
    %v574 = vunpack.c.h.b16 %v277
    %v575 = vunpack.c.l.b16 %v278
    %v576 = vunpack.c.h.b16 %v278
    %v577 = vunpack.c.l.b16 %v279
    %v578 = vunpack.c.h.b16 %v279
    %v579 = vunpack.c.l.b16 %v280
    %v580 = vunpack.c.h.b16 %v280
    %v581 = vunpack.c.l.b16 %v281
    %v582 = vunpack.c.h.b16 %v281
    %v583 = vunpack.c.l.b16 %v282
    %v584 = vunpack.c.h.b16 %v282
    %v585 = vunpack.c.l.b16 %v283
    %v586 = vunpack.c.h.b16 %v283
    %v587 = vunpack.c.l.b16 %v284
    %v588 = vunpack.c.h.b16 %v284
    %v589 = vunpack.c.l.b16 %v285
    %v590 = vunpack.c.h.b16 %v285
    %v591 = vunpack.c.l.b16 %v286
    %v592 = vunpack.c.h.b16 %v286
    %v593 = vunpack.c.l.b16 %v287
    %v594 = vunpack.c.h.b16 %v287
    %v595 = vunpack.c.l.b16 %v288
    %v596 = vunpack.c.h.b16 %v288
    %v597 = vunpack.c.l.b16 %v289
    %v598 = vunpack.c.h.b16 %v289
    %v599 = vunpack.c.l.b16 %v290
    %v600 = vunpack.c.h.b16 %v290
    %v601 = vunpack.c.l.b16 %v291
    %v602 = vunpack.c.h.b16 %v291
    %v603 = vunpack.c.l.b16 %v292
    %v604 = vunpack.c.h.b16 %v292
    %v605 = vunpack.c.l.b16 %v293
    %v606 = vunpack.c.h.b16 %v293
    %v607 = vunpack.c.l.b16 %v294
    %v608 = vunpack.c.h.b16 %v294
    %v609 = vunpack.c.l.b16 %v295
    %v610 = vunpack.c.h.b16 %v295
    %v611 = vunpack.c.l.b16 %v296
    %v612 = vunpack.c.h.b16 %v296
    %v613 = vunpack.c.l.b16 %v297
    %v614 = vunpack.c.h.b16 %v297
    %v615 = vunpack.c.l.b16 %v298
    %v616 = vunpack.c.h.b16 %v298
    %v617 = vunpack.c.l.b16 %v299
    %v618 = vunpack.c.h.b16 %v299
    %v619 = vunpack.c.l.b16 %v300
    %v620 = vunpack.c.h.b16 %v300
    %v621 = vunpack.c.l.b16 %v301
    %v622 = vunpack.c.h.b16 %v301
    %v623 = vunpack.c.l.b16 %v302
    %v624 = vunpack.c.h.b16 %v302
    %v625 = vunpack.c.l.b16 %v303
    %v626 = vunpack.c.h.b16 %v303
    %v627 = vunpack.c.l.b16 %v304
    %v628 = vunpack.c.h.b16 %v304
    %v629 = vunpack.c.l.b16 %v305
    %v630 = vunpack.c.h.b16 %v305
    %v631 = vunpack.c.l.b16 %v306
    %v632 = vunpack.c.h.b16 %v306
    %v633 = vunpack.c.l.b16 %v307
    %v634 = vunpack.c.h.b16 %v307
    %v635 = vunpack.c.l.b16 %v308
    %v636 = vunpack.c.h.b16 %v308
    %v637 = vunpack.c.l.b16 %v309
    %v638 = vunpack.c.h.b16 %v309
    %v639 = vunpack.c.l.b16 %v310
    %v640 = vunpack.c.h.b16 %v310
    %v641 = vunpack.c.l.b16 %v311
    %v642 = vunpack.c.h.b16 %v311
    %v643 = vunpack.c.l.b16 %v312
    %v644 = vunpack.c.h.b16 %v312
    %v645 = vunpack.c.l.b16 %v313
    %v646 = vunpack.c.h.b16 %v313
    %v647 = vunpack.c.l.b16 %v314
    %v648 = vunpack.c.h.b16 %v314
    %v649 = vunpack.c.l.b16 %v315
    %v650 = vunpack.c.h.b16 %v315
    %v651 = vunpack.c.l.b16 %v316
    %v652 = vunpack.c.h.b16 %v316
    %v653 = vunpack.c.l.b16 %v317
    %v654 = vunpack.c.h.b16 %v317
    %v655 = vunpack.c.l.b16 %v318
    %v656 = vunpack.c.h.b16 %v318
    %v657 = vunpack.c.l.b16 %v319
    %v658 = vunpack.c.h.b16 %v319
    %v659 = vunpack.c.l.b16 %v320
    %v660 = vunpack.c.h.b16 %v320
    %v661 = vunpack.c.l.b16 %v321
    %v662 = vunpack.c.h.b16 %v321
    %v663 = vunpack.c.l.b16 %v322
    %v664 = vunpack.c.h.b16 %v322
    %v665 = vunpack.c.l.b16 %v323
    %v666 = vunpack.c.h.b16 %v323
    %v667 = vunpack.c.l.b16 %v324
    %v668 = vunpack.c.h.b16 %v324
    %v669 = vunpack.c.l.b16 %v325
    %v670 = vunpack.c.h.b16 %v325
    %v671 = vpack.c.b16 %v513, %v511
    %v672 = vpack.c.b16 %v514, %v512
    %v673 = vpack.c.b16 %v517, %v515
    %v674 = vpack.c.b16 %v518, %v516
    %v675 = vpack.c.b16 %v521, %v519
    %v676 = vpack.c.b16 %v522, %v520
    %v677 = vpack.c.b16 %v525, %v523
    %v678 = vpack.c.b16 %v526, %v524
    %v679 = vpack.c.b16 %v529, %v527
    %v680 = vpack.c.b16 %v530, %v528
    %v681 = vpack.c.b16 %v533, %v531
    %v682 = vpack.c.b16 %v534, %v532
    %v683 = vpack.c.b16 %v537, %v535
    %v684 = vpack.c.b16 %v538, %v536
    %v685 = vpack.c.b16 %v541, %v539
    %v686 = vpack.c.b16 %v542, %v540
    %v687 = vpack.c.b16 %v545, %v543
    %v688 = vpack.c.b16 %v546, %v544
    %v689 = vpack.c.b16 %v549, %v547
    %v690 = vpack.c.b16 %v550, %v548
    %v691 = vpack.c.b16 %v553, %v551
    %v692 = vpack.c.b16 %v554, %v552
    %v693 = vpack.c.b16 %v557, %v555
    %v694 = vpack.c.b16 %v558, %v556
    %v695 = vpack.c.b16 %v561, %v559
    %v696 = vpack.c.b16 %v562, %v560
    %v697 = vpack.c.b16 %v565, %v563
    %v698 = vpack.c.b16 %v566, %v564
    %v699 = vpack.c.b16 %v569, %v567
    %v700 = vpack.c.b16 %v570, %v568
    %v701 = vpack.c.b16 %v573, %v571
    %v702 = vpack.c.b16 %v574, %v572
    %v703 = vpack.c.b16 %v577, %v575
    %v704 = vpack.c.b16 %v578, %v576
    %v705 = vpack.c.b16 %v581, %v579
    %v706 = vpack.c.b16 %v582, %v580
    %v707 = vpack.c.b16 %v585, %v583
    %v708 = vpack.c.b16 %v586, %v584
    %v709 = vpack.c.b16 %v589, %v587
    %v710 = vpack.c.b16 %v590, %v588
    %v711 = vpack.c.b16 %v593, %v591
    %v712 = vpack.c.b16 %v594, %v592
    %v713 = vpack.c.b16 %v597, %v595
    %v714 = vpack.c.b16 %v598, %v596
    %v715 = vpack.c.b16 %v601, %v599
    %v716 = vpack.c.b16 %v602, %v600
    %v717 = vpack.c.b16 %v605, %v603
    %v718 = vpack.c.b16 %v606, %v604
    %v719 = vpack.c.b16 %v609, %v607
    %v720 = vpack.c.b16 %v610, %v608
    %v721 = vpack.c.b16 %v613, %v611
    %v722 = vpack.c.b16 %v614, %v612
    %v723 = vpack.c.b16 %v617, %v615
    %v724 = vpack.c.b16 %v618, %v616
    %v725 = vpack.c.b16 %v621, %v619
    %v726 = vpack.c.b16 %v622, %v620
    %v727 = vpack.c.b16 %v625, %v623
    %v728 = vpack.c.b16 %v626, %v624
    %v729 = vpack.c.b16 %v629, %v627
    %v730 = vpack.c.b16 %v630, %v628
    %v731 = vpack.c.b16 %v633, %v631
    %v732 = vpack.c.b16 %v634, %v632
    %v733 = vpack.c.b16 %v637, %v635
    %v734 = vpack.c.b16 %v638, %v636
    %v735 = vpack.c.b16 %v641, %v639
    %v736 = vpack.c.b16 %v642, %v640
    %v737 = vpack.c.b16 %v645, %v643
    %v738 = vpack.c.b16 %v646, %v644
    %v739 = vpack.c.b16 %v649, %v647
    %v740 = vpack.c.b16 %v650, %v648
    %v741 = vpack.c.b16 %v653, %v651
    %v742 = vpack.c.b16 %v654, %v652
    %v743 = vpack.c.b16 %v657, %v655
    %v744 = vpack.c.b16 %v658, %v656
    %v745 = vpack.c.b16 %v661, %v659
    %v746 = vpack.c.b16 %v662, %v660
    %v747 = vpack.c.b16 %v665, %v663
    %v748 = vpack.c.b16 %v666, %v664
    %v749 = vpack.c.b16 %v669, %v667
    %v750 = vpack.c.b16 %v670, %v668
    %831 = vmatpush.bf16.msra.mxu0 %v685
    %832 = vmatpush.bf16.msra.mxu0 %v683
    %833 = vmatpush.bf16.msra.mxu0 %v681
    %834 = vmatpush.bf16.msra.mxu0 %v679
    %835 = vmatpush.bf16.msra.mxu0 %v677
    %836 = vmatpush.bf16.msra.mxu0 %v675
    %837 = vmatpush.bf16.msra.mxu0 %v673
    %838 = vmatpush.bf16.msra.mxu0 %v671
    %839 = vmatmul.bf16.gmra.mxu0 %v354
    %v840 = vpop.f32.mrf.mxu0
    %v841 = vadd.f32 %v328, %v840
    %v842 = vpop.f32.mrf.mxu0
    %v843 = vadd.f32 %v328, %v842
    %844 = vmatmul.bf16.gmra.mxu0 %v373
    %v845 = vpop.f32.mrf.mxu0
    %v846 = vadd.f32 %v328, %v845
    %v847 = vpop.f32.mrf.mxu0
    %v848 = vadd.f32 %v328, %v847
    %849 = vmatmul.bf16.gmra.mxu0 %v393
    %v850 = vpop.f32.mrf.mxu0
    %v851 = vadd.f32 %v328, %v850
    %v852 = vpop.f32.mrf.mxu0
    %v853 = vadd.f32 %v328, %v852
    %854 = vmatmul.bf16.gmra.mxu0 %v406
    %v855 = vpop.f32.mrf.mxu0
    %v856 = vadd.f32 %v328, %v855
    %v857 = vpop.f32.mrf.mxu0
    %858 = vdwg.mxu0
    %859 = vmatpush.bf16.msra.mxu0 %v701
    %860 = vmatpush.bf16.msra.mxu0 %v699
    %861 = vmatpush.bf16.msra.mxu0 %v697
    %862 = vmatpush.bf16.msra.mxu0 %v695
    %863 = vmatpush.bf16.msra.mxu0 %v693
    %864 = vmatpush.bf16.msra.mxu0 %v691
    %865 = vmatpush.bf16.msra.mxu0 %v689
    %866 = vmatpush.bf16.msra.mxu0 %v687
    %867 = vmatmul.bf16.gmra.mxu0 %v355
    %v868 = vpop.f32.mrf.mxu0
    %v869 = vadd.f32 %v841, %v868
    %v870 = vpop.f32.mrf.mxu0
    %v871 = vadd.f32 %v843, %v870
    %872 = vmatmul.bf16.gmra.mxu0 %v374
    %v873 = vpop.f32.mrf.mxu0
    %v874 = vadd.f32 %v846, %v873
    %v875 = vpop.f32.mrf.mxu0
    %v876 = vadd.f32 %v848, %v875
    %877 = vmatmul.bf16.gmra.mxu0 %v394
    %v878 = vpop.f32.mrf.mxu0
    %v879 = vadd.f32 %v851, %v878
    %v880 = vpop.f32.mrf.mxu0
    %v881 = vadd.f32 %v853, %v880
    %882 = vmatmul.bf16.gmra.mxu0 %v407
    %v883 = vpop.f32.mrf.mxu0
    %v884 = vadd.f32 %v856, %v883
    %v885 = vpop.f32.mrf.mxu0
    %886 = vdwg.mxu0
    %887 = vmatpush.bf16.msra.mxu0 %v717
    %888 = vmatpush.bf16.msra.mxu0 %v715
    %889 = vmatpush.bf16.msra.mxu0 %v713
    %890 = vmatpush.bf16.msra.mxu0 %v711
    %891 = vmatpush.bf16.msra.mxu0 %v709
    %892 = vmatpush.bf16.msra.mxu0 %v707
    %893 = vmatpush.bf16.msra.mxu0 %v705
    %894 = vmatpush.bf16.msra.mxu0 %v703
    %895 = vmatmul.bf16.gmra.mxu0 %v356
    %v896 = vpop.f32.mrf.mxu0
    %v897 = vadd.f32 %v869, %v896
    %v898 = vpop.f32.mrf.mxu0
    %v899 = vadd.f32 %v871, %v898
    %900 = vmatmul.bf16.gmra.mxu0 %v375
    %v901 = vpop.f32.mrf.mxu0
    %v902 = vadd.f32 %v874, %v901
    %v903 = vpop.f32.mrf.mxu0
    %v904 = vadd.f32 %v876, %v903
    %905 = vmatmul.bf16.gmra.mxu0 %v395
    %v906 = vpop.f32.mrf.mxu0
    %v907 = vadd.f32 %v879, %v906
    %v908 = vpop.f32.mrf.mxu0
    %v909 = vadd.f32 %v881, %v908
    %910 = vmatmul.bf16.gmra.mxu0 %v408
    %v911 = vpop.f32.mrf.mxu0
    %v912 = vadd.f32 %v884, %v911
    %v913 = vpop.f32.mrf.mxu0
    %914 = vdwg.mxu0
    %915 = vmatpush.bf16.msra.mxu0 %v733
    %916 = vmatpush.bf16.msra.mxu0 %v731
    %917 = vmatpush.bf16.msra.mxu0 %v729
    %918 = vmatpush.bf16.msra.mxu0 %v727
    %919 = vmatpush.bf16.msra.mxu0 %v725
    %920 = vmatpush.bf16.msra.mxu0 %v723
    %921 = vmatpush.bf16.msra.mxu0 %v721
    %922 = vmatpush.bf16.msra.mxu0 %v719
    %923 = vmatmul.bf16.gmra.mxu0 %v357
    %v924 = vpop.f32.mrf.mxu0
    %v925 = vadd.f32 %v897, %v924
    %v926 = vpop.f32.mrf.mxu0
    %v927 = vadd.f32 %v899, %v926
    %928 = vmatmul.bf16.gmra.mxu0 %v376
    %v929 = vpop.f32.mrf.mxu0
    %v930 = vadd.f32 %v902, %v929
    %v931 = vpop.f32.mrf.mxu0
    %v932 = vadd.f32 %v904, %v931
    %933 = vmatmul.bf16.gmra.mxu0 %v396
    %v934 = vpop.f32.mrf.mxu0
    %v935 = vadd.f32 %v907, %v934
    %v936 = vpop.f32.mrf.mxu0
    %v937 = vadd.f32 %v909, %v936
    %938 = vmatmul.bf16.gmra.mxu0 %v409
    %v939 = vpop.f32.mrf.mxu0
    %v940 = vadd.f32 %v912, %v939
    %v941 = vpop.f32.mrf.mxu0
    %942 = vdwg.mxu0
    %943 = vmatpush.bf16.msra.mxu0 %v749
    %944 = vmatpush.bf16.msra.mxu0 %v747
    %945 = vmatpush.bf16.msra.mxu0 %v745
    %946 = vmatpush.bf16.msra.mxu0 %v743
    %947 = vmatpush.bf16.msra.mxu0 %v741
    %948 = vmatpush.bf16.msra.mxu0 %v739
    %949 = vmatpush.bf16.msra.mxu0 %v737
    %950 = vmatpush.bf16.msra.mxu0 %v735
    %951 = vmatmul.bf16.gmra.mxu0 %v358
    %v952 = vpop.f32.mrf.mxu0
    %v953 = vadd.f32 %v925, %v952
    %v954 = vpop.f32.mrf.mxu0
    %v955 = vadd.f32 %v927, %v954
    %956 = vmatmul.bf16.gmra.mxu0 %v377
    %v957 = vpop.f32.mrf.mxu0
    %v958 = vadd.f32 %v930, %v957
    %v959 = vpop.f32.mrf.mxu0
    %v960 = vadd.f32 %v932, %v959
    %961 = vmatmul.bf16.gmra.mxu0 %v397
    %v962 = vpop.f32.mrf.mxu0
    %v963 = vadd.f32 %v935, %v962
    %v964 = vpop.f32.mrf.mxu0
    %v965 = vadd.f32 %v937, %v964
    %966 = vmatmul.bf16.gmra.mxu0 %v410
    %v967 = vpop.f32.mrf.mxu0
    %v968 = vadd.f32 %v940, %v967
    %v969 = vpop.f32.mrf.mxu0
    %970 = vdwg.mxu0
    %971 = vmatpush.bf16.msra.mxu0 %v686
    %972 = vmatpush.bf16.msra.mxu0 %v684
    %973 = vmatpush.bf16.msra.mxu0 %v682
    %974 = vmatpush.bf16.msra.mxu0 %v680
    %975 = vmatpush.bf16.msra.mxu0 %v678
    %976 = vmatpush.bf16.msra.mxu0 %v676
    %977 = vmatpush.bf16.msra.mxu0 %v674
    %978 = vmatpush.bf16.msra.mxu0 %v672
    %979 = vmatmul.bf16.gmra.mxu0 %v354
    %v980 = vpop.f32.mrf.mxu0
    %v981 = vadd.f32 %v329, %v980
    %v982 = vpop.f32.mrf.mxu0
    %v983 = vadd.f32 %v329, %v982
    %984 = vmatmul.bf16.gmra.mxu0 %v373
    %v985 = vpop.f32.mrf.mxu0
    %v986 = vadd.f32 %v329, %v985
    %v987 = vpop.f32.mrf.mxu0
    %v988 = vadd.f32 %v329, %v987
    %989 = vmatmul.bf16.gmra.mxu0 %v393
    %v990 = vpop.f32.mrf.mxu0
    %v991 = vadd.f32 %v329, %v990
    %v992 = vpop.f32.mrf.mxu0
    %v993 = vadd.f32 %v329, %v992
    %994 = vmatmul.bf16.gmra.mxu0 %v406
    %v995 = vpop.f32.mrf.mxu0
    %v996 = vadd.f32 %v329, %v995
    %v997 = vpop.f32.mrf.mxu0
    %998 = vdwg.mxu0
    %999 = vmatpush.bf16.msra.mxu0 %v702
    %1000 = vmatpush.bf16.msra.mxu0 %v700
    %1001 = vmatpush.bf16.msra.mxu0 %v698
    %1002 = vmatpush.bf16.msra.mxu0 %v696
    %1003 = vmatpush.bf16.msra.mxu0 %v694
    %1004 = vmatpush.bf16.msra.mxu0 %v692
    %1005 = vmatpush.bf16.msra.mxu0 %v690
    %1006 = vmatpush.bf16.msra.mxu0 %v688
    %1007 = vmatmul.bf16.gmra.mxu0 %v355
    %v1008 = vpop.f32.mrf.mxu0
    %v1009 = vadd.f32 %v981, %v1008
    %v1010 = vpop.f32.mrf.mxu0
    %v1011 = vadd.f32 %v983, %v1010
    %1012 = vmatmul.bf16.gmra.mxu0 %v374
    %v1013 = vpop.f32.mrf.mxu0
    %v1014 = vadd.f32 %v986, %v1013
    %v1015 = vpop.f32.mrf.mxu0
    %v1016 = vadd.f32 %v988, %v1015
    %1017 = vmatmul.bf16.gmra.mxu0 %v394
    %v1018 = vpop.f32.mrf.mxu0
    %v1019 = vadd.f32 %v991, %v1018
    %v1020 = vpop.f32.mrf.mxu0
    %v1021 = vadd.f32 %v993, %v1020
    %1022 = vmatmul.bf16.gmra.mxu0 %v407
    %v1023 = vpop.f32.mrf.mxu0
    %v1024 = vadd.f32 %v996, %v1023
    %v1025 = vpop.f32.mrf.mxu0
    %1026 = vdwg.mxu0
    %1027 = vmatpush.bf16.msra.mxu0 %v718
    %1028 = vmatpush.bf16.msra.mxu0 %v716
    %1029 = vmatpush.bf16.msra.mxu0 %v714
    %1030 = vmatpush.bf16.msra.mxu0 %v712
    %1031 = vmatpush.bf16.msra.mxu0 %v710
    %1032 = vmatpush.bf16.msra.mxu0 %v708
    %1033 = vmatpush.bf16.msra.mxu0 %v706
    %1034 = vmatpush.bf16.msra.mxu0 %v704
    %1035 = vmatmul.bf16.gmra.mxu0 %v356
    %v1036 = vpop.f32.mrf.mxu0
    %v1037 = vadd.f32 %v1009, %v1036
    %v1038 = vpop.f32.mrf.mxu0
    %v1039 = vadd.f32 %v1011, %v1038
    %1040 = vmatmul.bf16.gmra.mxu0 %v375
    %v1041 = vpop.f32.mrf.mxu0
    %v1042 = vadd.f32 %v1014, %v1041
    %v1043 = vpop.f32.mrf.mxu0
    %v1044 = vadd.f32 %v1016, %v1043
    %1045 = vmatmul.bf16.gmra.mxu0 %v395
    %v1046 = vpop.f32.mrf.mxu0
    %v1047 = vadd.f32 %v1019, %v1046
    %v1048 = vpop.f32.mrf.mxu0
    %v1049 = vadd.f32 %v1021, %v1048
    %1050 = vmatmul.bf16.gmra.mxu0 %v408
    %v1051 = vpop.f32.mrf.mxu0
    %v1052 = vadd.f32 %v1024, %v1051
    %v1053 = vpop.f32.mrf.mxu0
    %1054 = vdwg.mxu0
    %1055 = vmatpush.bf16.msra.mxu0 %v734
    %1056 = vmatpush.bf16.msra.mxu0 %v732
    %1057 = vmatpush.bf16.msra.mxu0 %v730
    %1058 = vmatpush.bf16.msra.mxu0 %v728
    %1059 = vmatpush.bf16.msra.mxu0 %v726
    %1060 = vmatpush.bf16.msra.mxu0 %v724
    %1061 = vmatpush.bf16.msra.mxu0 %v722
    %1062 = vmatpush.bf16.msra.mxu0 %v720
    %1063 = vmatmul.bf16.gmra.mxu0 %v357
    %v1064 = vpop.f32.mrf.mxu0
    %v1065 = vadd.f32 %v1037, %v1064
    %v1066 = vpop.f32.mrf.mxu0
    %v1067 = vadd.f32 %v1039, %v1066
    %1068 = vmatmul.bf16.gmra.mxu0 %v376
    %v1069 = vpop.f32.mrf.mxu0
    %v1070 = vadd.f32 %v1042, %v1069
    %v1071 = vpop.f32.mrf.mxu0
    %v1072 = vadd.f32 %v1044, %v1071
    %1073 = vmatmul.bf16.gmra.mxu0 %v396
    %v1074 = vpop.f32.mrf.mxu0
    %v1075 = vadd.f32 %v1047, %v1074
    %v1076 = vpop.f32.mrf.mxu0
    %v1077 = vadd.f32 %v1049, %v1076
    %1078 = vmatmul.bf16.gmra.mxu0 %v409
    %v1079 = vpop.f32.mrf.mxu0
    %v1080 = vadd.f32 %v1052, %v1079
    %v1081 = vpop.f32.mrf.mxu0
    %1082 = vdwg.mxu0
    %1083 = vmatpush.bf16.msra.mxu0 %v750
    %1084 = vmatpush.bf16.msra.mxu0 %v748
    %1085 = vmatpush.bf16.msra.mxu0 %v746
    %1086 = vmatpush.bf16.msra.mxu0 %v744
    %1087 = vmatpush.bf16.msra.mxu0 %v742
    %1088 = vmatpush.bf16.msra.mxu0 %v740
    %1089 = vmatpush.bf16.msra.mxu0 %v738
    %1090 = vmatpush.bf16.msra.mxu0 %v736
    %1091 = vmatmul.bf16.gmra.mxu0 %v358
    %v1092 = vpop.f32.mrf.mxu0
    %v1093 = vadd.f32 %v1065, %v1092
    %v1094 = vpop.f32.mrf.mxu0
    %v1095 = vadd.f32 %v1067, %v1094
    %1096 = vmatmul.bf16.gmra.mxu0 %v377
    %v1097 = vpop.f32.mrf.mxu0
    %v1098 = vadd.f32 %v1070, %v1097
    %v1099 = vpop.f32.mrf.mxu0
    %v1100 = vadd.f32 %v1072, %v1099
    %1101 = vmatmul.bf16.gmra.mxu0 %v397
    %v1102 = vpop.f32.mrf.mxu0
    %v1103 = vadd.f32 %v1075, %v1102
    %v1104 = vpop.f32.mrf.mxu0
    %v1105 = vadd.f32 %v1077, %v1104
    %1106 = vmatmul.bf16.gmra.mxu0 %v410
    %v1107 = vpop.f32.mrf.mxu0
    %v1108 = vadd.f32 %v1080, %v1107
    %v1109 = vpop.f32.mrf.mxu0
    %1110 = vdwg.mxu0
    %v1111 = vmax.f32 %v953, 0.0
    %v1112 = vmax.f32 %v1093, 0.0
    %v1113 = vmax.f32 %v955, 0.0
    %v1114 = vmax.f32 %v1095, 0.0
    %v1115 = vmax.f32 %v958, 0.0
    %v1116 = vmax.f32 %v1098, 0.0
    %v1117 = vmax.f32 %v960, 0.0
    %v1118 = vmax.f32 %v1100, 0.0
    %v1119 = vmax.f32 %v963, 0.0
    %v1120 = vmax.f32 %v1103, 0.0
    %v1121 = vmax.f32 %v965, 0.0
    %v1122 = vmax.f32 %v1105, 0.0
    %v1123 = vmax.f32 %v968, 0.0
    %v1124 = vmax.f32 %v1108, 0.0
    %v1125 = vmax.f32 %v1111, %v1112
    %v1126 = vmax.f32 %v1113, %v1114
    %v1127 = vmax.f32 %v1115, %v1116
    %v1128 = vmax.f32 %v1117, %v1118
    %v1129 = vmax.f32 %v1119, %v1120
    %v1130 = vmax.f32 %v1121, %v1122
    %v1131 = vmax.f32 %v1123, %v1124
    %v1139 = vrot.slane %v1125, 2
    %v1140 = vrot.slane %v1125, 4
    %v1141 = vrot.slane %v1125, 6
    %v1142 = vrot.slane %v1126, 2
    %v1143 = vrot.slane %v1126, 4
    %v1144 = vrot.slane %v1126, 6
    %v1145 = vrot.slane %v1127, 2
    %v1146 = vrot.slane %v1127, 4
    %v1147 = vrot.slane %v1127, 6
    %v1148 = vrot.slane %v1128, 2
    %v1149 = vrot.slane %v1128, 4
    %v1150 = vrot.slane %v1128, 6
    %v1151 = vrot.slane %v1129, 2
    %v1152 = vrot.slane %v1129, 4
    %v1153 = vrot.slane %v1129, 6
    %v1154 = vrot.slane %v1130, 2
    %v1155 = vrot.slane %v1130, 4
    %v1156 = vrot.slane %v1130, 6
    %v1157 = vrot.slane %v1131, 2
    %v1158 = vrot.slane %v1131, 4
    %v1159 = vrot.slane %v1131, 6
    %v1181 = vrot.slane %v1125, 7
    %v1182 = vrot.slane %v1181, 2
    %v1183 = vrot.slane %v1139, 7
    %v1184 = vrot.slane %v1183, 2
    %v1185 = vrot.slane %v1140, 7
    %v1186 = vrot.slane %v1185, 2
    %v1187 = vrot.slane %v1141, 7
    %v1188 = vrot.slane %v1187, 2
    %v1189 = vrot.slane %v1126, 7
    %v1190 = vrot.slane %v1189, 2
    %v1191 = vrot.slane %v1142, 7
    %v1192 = vrot.slane %v1191, 2
    %v1193 = vrot.slane %v1143, 7
    %v1194 = vrot.slane %v1193, 2
    %v1195 = vrot.slane %v1144, 7
    %v1196 = vrot.slane %v1195, 2
    %v1197 = vrot.slane %v1127, 7
    %v1198 = vrot.slane %v1197, 2
    %v1199 = vrot.slane %v1145, 7
    %v1200 = vrot.slane %v1199, 2
    %v1201 = vrot.slane %v1146, 7
    %v1202 = vrot.slane %v1201, 2
    %v1203 = vrot.slane %v1147, 7
    %v1204 = vrot.slane %v1203, 2
    %v1205 = vrot.slane %v1128, 7
    %v1206 = vrot.slane %v1205, 2
    %v1207 = vrot.slane %v1148, 7
    %v1208 = vrot.slane %v1207, 2
    %v1209 = vrot.slane %v1149, 7
    %v1210 = vrot.slane %v1209, 2
    %v1211 = vrot.slane %v1150, 7
    %v1212 = vrot.slane %v1211, 2
    %v1213 = vrot.slane %v1129, 7
    %v1214 = vrot.slane %v1213, 2
    %v1215 = vrot.slane %v1151, 7
    %v1216 = vrot.slane %v1215, 2
    %v1217 = vrot.slane %v1152, 7
    %v1218 = vrot.slane %v1217, 2
    %v1219 = vrot.slane %v1153, 7
    %v1220 = vrot.slane %v1219, 2
    %v1221 = vrot.slane %v1130, 7
    %v1222 = vrot.slane %v1221, 2
    %v1223 = vrot.slane %v1154, 7
    %v1224 = vrot.slane %v1223, 2
    %v1225 = vrot.slane %v1155, 7
    %v1226 = vrot.slane %v1225, 2
    %v1227 = vrot.slane %v1156, 7
    %v1228 = vrot.slane %v1227, 2
    %v1229 = vrot.slane %v1131, 7
    %v1230 = vrot.slane %v1229, 2
    %v1231 = vrot.slane %v1157, 7
    %v1232 = vrot.slane %v1231, 2
    %v1233 = vrot.slane %v1158, 7
    %v1234 = vrot.slane %v1233, 2
    %v1235 = vrot.slane %v1159, 7
    %v1236 = vrot.slane %v1235, 2
    %v1265 = vmax.f32 %v1125, %v1182
    %v1266 = vmax.f32 %v1139, %v1184
    %v1267 = vmax.f32 %v1140, %v1186
    %v1268 = vmax.f32 %v1141, %v1188
    %v1269 = vmax.f32 %v1126, %v1190
    %v1270 = vmax.f32 %v1142, %v1192
    %v1271 = vmax.f32 %v1143, %v1194
    %v1272 = vmax.f32 %v1144, %v1196
    %v1273 = vmax.f32 %v1127, %v1198
    %v1274 = vmax.f32 %v1145, %v1200
    %v1275 = vmax.f32 %v1146, %v1202
    %v1276 = vmax.f32 %v1147, %v1204
    %v1277 = vmax.f32 %v1128, %v1206
    %v1278 = vmax.f32 %v1148, %v1208
    %v1279 = vmax.f32 %v1149, %v1210
    %v1280 = vmax.f32 %v1150, %v1212
    %v1281 = vmax.f32 %v1129, %v1214
    %v1282 = vmax.f32 %v1151, %v1216
    %v1283 = vmax.f32 %v1152, %v1218
    %v1284 = vmax.f32 %v1153, %v1220
    %v1285 = vmax.f32 %v1130, %v1222
    %v1286 = vmax.f32 %v1154, %v1224
    %v1287 = vmax.f32 %v1155, %v1226
    %v1288 = vmax.f32 %v1156, %v1228
    %v1289 = vmax.f32 %v1131, %v1230
    %v1290 = vmax.f32 %v1157, %v1232
    %v1291 = vmax.f32 %v1158, %v1234
    %v1292 = vmax.f32 %v1159, %v1236
    %v1293 = vpack.c.bf16 %v1265, %v1265
    %v1294 = vpack.c.bf16 %v1266, %v1266
    %v1295 = vpack.c.bf16 %v1267, %v1267
    %v1296 = vpack.c.bf16 %v1268, %v1268
    %v1297 = vpack.c.bf16 %v1269, %v1269
    %v1298 = vpack.c.bf16 %v1270, %v1270
    %v1299 = vpack.c.bf16 %v1271, %v1271
    %v1300 = vpack.c.bf16 %v1272, %v1272
    %v1301 = vpack.c.bf16 %v1273, %v1273
    %v1302 = vpack.c.bf16 %v1274, %v1274
    %v1303 = vpack.c.bf16 %v1275, %v1275
    %v1304 = vpack.c.bf16 %v1276, %v1276
    %v1305 = vpack.c.bf16 %v1277, %v1277
    %v1306 = vpack.c.bf16 %v1278, %v1278
    %v1307 = vpack.c.bf16 %v1279, %v1279
    %v1308 = vpack.c.bf16 %v1280, %v1280
    %v1309 = vpack.c.bf16 %v1281, %v1281
    %v1310 = vpack.c.bf16 %v1282, %v1282
    %v1311 = vpack.c.bf16 %v1283, %v1283
    %v1312 = vpack.c.bf16 %v1284, %v1284
    %v1313 = vpack.c.bf16 %v1285, %v1285
    %v1314 = vpack.c.bf16 %v1286, %v1286
    %v1315 = vpack.c.bf16 %v1287, %v1287
    %v1316 = vpack.c.bf16 %v1288, %v1288
    %v1317 = vpack.c.bf16 %v1289, %v1289
    %v1318 = vpack.c.bf16 %v1290, %v1290
    %v1319 = vpack.c.bf16 %v1291, %v1291
    %v1320 = vpack.c.bf16 %v1292, %v1292
    %v1341 = vunpack.c.l.b16 %v1293
    %v1342 = vunpack.c.l.b16 %v1294
    %v1343 = vunpack.c.l.b16 %v1295
    %v1344 = vunpack.c.l.b16 %v1296
    %v1345 = vunpack.c.l.b16 %v1297
    %v1346 = vunpack.c.l.b16 %v1298
    %v1347 = vunpack.c.l.b16 %v1299
    %v1348 = vunpack.c.l.b16 %v1300
    %v1349 = vunpack.c.l.b16 %v1301
    %v1350 = vunpack.c.l.b16 %v1302
    %v1351 = vunpack.c.l.b16 %v1307
    %v1352 = vunpack.c.l.b16 %v1308
    %v1353 = vunpack.c.l.b16 %v1309
    %v1354 = vunpack.c.l.b16 %v1310
    %v1355 = vunpack.c.l.b16 %v1311
    %v1356 = vunpack.c.l.b16 %v1312
    %v1357 = vunpack.c.l.b16 %v1313
    %v1358 = vunpack.c.l.b16 %v1314
    %v1359 = vunpack.c.l.b16 %v1315
    %v1360 = vunpack.c.l.b16 %v1316
    %v1361 = vpack.c.b16 %v1341, %v1341
    %v1362 = vpack.c.b16 %v1342, %v1342
    %v1363 = vpack.c.b16 %v1343, %v1343
    %v1364 = vpack.c.b16 %v1344, %v1344
    %v1365 = vpack.c.b16 %v1345, %v1345
    %v1366 = vpack.c.b16 %v1346, %v1346
    %v1367 = vpack.c.b16 %v1347, %v1347
    %v1368 = vpack.c.b16 %v1348, %v1348
    %v1369 = vpack.c.b16 %v1349, %v1349
    %v1370 = vpack.c.b16 %v1350, %v1350
    %v1371 = vpack.c.b16 %v1351, %v1351
    %v1372 = vpack.c.b16 %v1352, %v1352
    %v1373 = vpack.c.b16 %v1353, %v1353
    %v1374 = vpack.c.b16 %v1354, %v1354
    %v1375 = vpack.c.b16 %v1355, %v1355
    %v1376 = vpack.c.b16 %v1356, %v1356
    %v1377 = vpack.c.b16 %v1357, %v1357
    %v1378 = vpack.c.b16 %v1358, %v1358
    %v1379 = vpack.c.b16 %v1359, %v1359
    %v1380 = vpack.c.b16 %v1360, %v1360
    %v1381 = vunpack.c.l.b16 %v1361
    %v1382 = vunpack.c.l.b16 %v1362
    %v1383 = vunpack.c.l.b16 %v1363
    %v1384 = vunpack.c.l.b16 %v1364
    %v1385 = vunpack.c.l.b16 %v1365
    %v1386 = vunpack.c.l.b16 %v1366
    %v1387 = vunpack.c.l.b16 %v1367
    %v1388 = vunpack.c.l.b16 %v1368
    %v1389 = vunpack.c.l.b16 %v1369
    %v1390 = vunpack.c.l.b16 %v1370
    %v1391 = vunpack.c.l.b16 %v1371
    %v1392 = vunpack.c.l.b16 %v1372
    %v1393 = vunpack.c.l.b16 %v1373
    %v1394 = vunpack.c.l.b16 %v1374
    %v1395 = vunpack.c.l.b16 %v1375
    %v1396 = vunpack.c.l.b16 %v1376
    %v1397 = vunpack.c.l.b16 %v1377
    %v1398 = vunpack.c.l.b16 %v1378
    %v1399 = vunpack.c.l.b16 %v1379
    %v1400 = vunpack.c.l.b16 %v1380
    %v1401 = vrot.slane %v1382, 7
    %vm1402 = vcmask 1041409
    %v1403 = vsel %vm1402, %v1401, %v1381
    %v1404 = vrot.slane %v1383, 6
    %vm1405 = vcmask 1042434
    %v1406 = vsel %vm1405, %v1404, %v1403
    %v1407 = vrot.slane %v1384, 5
    %vm1408 = vcmask 1043459
    %v1409 = vsel %vm1408, %v1407, %v1406
    %v1410 = vrot.slane %v1385, 4
    %vm1411 = vcmask 1044484
    %v1412 = vsel %vm1411, %v1410, %v1409
    %v1413 = vrot.slane %v1386, 3
    %vm1414 = vcmask 1045509
    %v1415 = vsel %vm1414, %v1413, %v1412
    %v1416 = vrot.slane %v1387, 2
    %vm1417 = vcmask 1046534
    %v1418 = vsel %vm1417, %v1416, %v1415
    %v1419 = vrot.slane %v1388, 1
    %vm1420 = vcmask 1047559
    %v1421 = vsel %vm1420, %v1419, %v1418
    %v1422 = vrot.slane %v1390, 7
    %v1423 = vsel %vm1402, %v1422, %v1389
    %v1424 = vrot.slane %v1392, 7
    %v1425 = vsel %vm1402, %v1424, %v1391
    %v1426 = vrot.slane %v1393, 6
    %v1427 = vsel %vm1405, %v1426, %v1425
    %v1428 = vrot.slane %v1394, 5
    %v1429 = vsel %vm1408, %v1428, %v1427
    %v1430 = vrot.slane %v1395, 4
    %v1431 = vsel %vm1411, %v1430, %v1429
    %v1432 = vrot.slane %v1396, 3
    %v1433 = vsel %vm1414, %v1432, %v1431
    %v1434 = vrot.slane %v1397, 2
    %v1435 = vsel %vm1417, %v1434, %v1433
    %v1436 = vrot.slane %v1398, 1
    %v1437 = vsel %vm1420, %v1436, %v1435
    %v1438 = vrot.slane %v1400, 7
    %v1439 = vsel %vm1402, %v1438, %v1399
    %v1440 = vpack.c.b16 %v1423, %v1421
    %v1441 = vpack.c.b16 %v1439, %v1437
    %v1444 = vunpack.c.l.b16 %v1303
    %v1445 = vunpack.c.l.b16 %v1317
    %v1446 = vpack.c.b16 %v1444, %v1444
    %v1447 = vpack.c.b16 %v1445, %v1445
    %v1448 = vunpack.c.l.b16 %v1446
    %v1449 = vunpack.c.l.b16 %v1447
    %v1450 = vrot.slane %v1383, 7
    %v1451 = vsel %vm1402, %v1450, %v1382
    %v1452 = vrot.slane %v1384, 6
    %v1453 = vsel %vm1405, %v1452, %v1451
    %v1454 = vrot.slane %v1385, 5
    %v1455 = vsel %vm1408, %v1454, %v1453
    %v1456 = vrot.slane %v1386, 4
    %v1457 = vsel %vm1411, %v1456, %v1455
    %v1458 = vrot.slane %v1387, 3
    %v1459 = vsel %vm1414, %v1458, %v1457
    %v1460 = vrot.slane %v1388, 2
    %v1461 = vsel %vm1417, %v1460, %v1459
    %v1462 = vrot.slane %v1389, 1
    %v1463 = vsel %vm1420, %v1462, %v1461
    %v1464 = vrot.slane %v1448, 7
    %v1465 = vsel %vm1402, %v1464, %v1390
    %v1466 = vrot.slane %v1393, 7
    %v1467 = vsel %vm1402, %v1466, %v1392
    %v1468 = vrot.slane %v1394, 6
    %v1469 = vsel %vm1405, %v1468, %v1467
    %v1470 = vrot.slane %v1395, 5
    %v1471 = vsel %vm1408, %v1470, %v1469
    %v1472 = vrot.slane %v1396, 4
    %v1473 = vsel %vm1411, %v1472, %v1471
    %v1474 = vrot.slane %v1397, 3
    %v1475 = vsel %vm1414, %v1474, %v1473
    %v1476 = vrot.slane %v1398, 2
    %v1477 = vsel %vm1417, %v1476, %v1475
    %v1478 = vrot.slane %v1399, 1
    %v1479 = vsel %vm1420, %v1478, %v1477
    %v1480 = vrot.slane %v1449, 7
    %v1481 = vsel %vm1402, %v1480, %v1400
    %v1482 = vpack.c.b16 %v1465, %v1463
    %v1483 = vpack.c.b16 %v1481, %v1479
    %v1486 = vunpack.c.l.b16 %v1304
    %v1487 = vunpack.c.l.b16 %v1318
    %v1488 = vpack.c.b16 %v1486, %v1486
    %v1489 = vpack.c.b16 %v1487, %v1487
    %v1490 = vunpack.c.l.b16 %v1488
    %v1491 = vunpack.c.l.b16 %v1489
    %v1492 = vrot.slane %v1384, 7
    %v1493 = vsel %vm1402, %v1492, %v1383
    %v1494 = vrot.slane %v1385, 6
    %v1495 = vsel %vm1405, %v1494, %v1493
    %v1496 = vrot.slane %v1386, 5
    %v1497 = vsel %vm1408, %v1496, %v1495
    %v1498 = vrot.slane %v1387, 4
    %v1499 = vsel %vm1411, %v1498, %v1497
    %v1500 = vrot.slane %v1388, 3
    %v1501 = vsel %vm1414, %v1500, %v1499
    %v1502 = vrot.slane %v1389, 2
    %v1503 = vsel %vm1417, %v1502, %v1501
    %v1504 = vrot.slane %v1390, 1
    %v1505 = vsel %vm1420, %v1504, %v1503
    %v1506 = vrot.slane %v1490, 7
    %v1507 = vsel %vm1402, %v1506, %v1448
    %v1508 = vrot.slane %v1394, 7
    %v1509 = vsel %vm1402, %v1508, %v1393
    %v1510 = vrot.slane %v1395, 6
    %v1511 = vsel %vm1405, %v1510, %v1509
    %v1512 = vrot.slane %v1396, 5
    %v1513 = vsel %vm1408, %v1512, %v1511
    %v1514 = vrot.slane %v1397, 4
    %v1515 = vsel %vm1411, %v1514, %v1513
    %v1516 = vrot.slane %v1398, 3
    %v1517 = vsel %vm1414, %v1516, %v1515
    %v1518 = vrot.slane %v1399, 2
    %v1519 = vsel %vm1417, %v1518, %v1517
    %v1520 = vrot.slane %v1400, 1
    %v1521 = vsel %vm1420, %v1520, %v1519
    %v1522 = vrot.slane %v1491, 7
    %v1523 = vsel %vm1402, %v1522, %v1449
    %v1524 = vpack.c.b16 %v1507, %v1505
    %v1525 = vpack.c.b16 %v1523, %v1521
    %v1528 = vunpack.c.l.b16 %v1305
    %v1529 = vunpack.c.l.b16 %v1319
    %v1530 = vpack.c.b16 %v1528, %v1528
    %v1531 = vpack.c.b16 %v1529, %v1529
    %v1532 = vunpack.c.l.b16 %v1530
    %v1533 = vunpack.c.l.b16 %v1531
    %v1534 = vrot.slane %v1385, 7
    %v1535 = vsel %vm1402, %v1534, %v1384
    %v1536 = vrot.slane %v1386, 6
    %v1537 = vsel %vm1405, %v1536, %v1535
    %v1538 = vrot.slane %v1387, 5
    %v1539 = vsel %vm1408, %v1538, %v1537
    %v1540 = vrot.slane %v1388, 4
    %v1541 = vsel %vm1411, %v1540, %v1539
    %v1542 = vrot.slane %v1389, 3
    %v1543 = vsel %vm1414, %v1542, %v1541
    %v1544 = vrot.slane %v1390, 2
    %v1545 = vsel %vm1417, %v1544, %v1543
    %v1546 = vrot.slane %v1448, 1
    %v1547 = vsel %vm1420, %v1546, %v1545
    %v1548 = vrot.slane %v1532, 7
    %v1549 = vsel %vm1402, %v1548, %v1490
    %v1550 = vrot.slane %v1395, 7
    %v1551 = vsel %vm1402, %v1550, %v1394
    %v1552 = vrot.slane %v1396, 6
    %v1553 = vsel %vm1405, %v1552, %v1551
    %v1554 = vrot.slane %v1397, 5
    %v1555 = vsel %vm1408, %v1554, %v1553
    %v1556 = vrot.slane %v1398, 4
    %v1557 = vsel %vm1411, %v1556, %v1555
    %v1558 = vrot.slane %v1399, 3
    %v1559 = vsel %vm1414, %v1558, %v1557
    %v1560 = vrot.slane %v1400, 2
    %v1561 = vsel %vm1417, %v1560, %v1559
    %v1562 = vrot.slane %v1449, 1
    %v1563 = vsel %vm1420, %v1562, %v1561
    %v1564 = vrot.slane %v1533, 7
    %v1565 = vsel %vm1402, %v1564, %v1491
    %v1566 = vpack.c.b16 %v1549, %v1547
    %v1567 = vpack.c.b16 %v1565, %v1563
    %v1570 = vunpack.c.l.b16 %v1306
    %v1571 = vunpack.c.l.b16 %v1320
    %v1572 = vpack.c.b16 %v1570, %v1570
    %v1573 = vpack.c.b16 %v1571, %v1571
    %v1574 = vunpack.c.l.b16 %v1572
    %v1575 = vunpack.c.l.b16 %v1573
    %v1576 = vrot.slane %v1386, 7
    %v1577 = vsel %vm1402, %v1576, %v1385
    %v1578 = vrot.slane %v1387, 6
    %v1579 = vsel %vm1405, %v1578, %v1577
    %v1580 = vrot.slane %v1388, 5
    %v1581 = vsel %vm1408, %v1580, %v1579
    %v1582 = vrot.slane %v1389, 4
    %v1583 = vsel %vm1411, %v1582, %v1581
    %v1584 = vrot.slane %v1390, 3
    %v1585 = vsel %vm1414, %v1584, %v1583
    %v1586 = vrot.slane %v1448, 2
    %v1587 = vsel %vm1417, %v1586, %v1585
    %v1588 = vrot.slane %v1490, 1
    %v1589 = vsel %vm1420, %v1588, %v1587
    %v1590 = vrot.slane %v1574, 7
    %v1591 = vsel %vm1402, %v1590, %v1532
    %v1592 = vrot.slane %v1396, 7
    %v1593 = vsel %vm1402, %v1592, %v1395
    %v1594 = vrot.slane %v1397, 6
    %v1595 = vsel %vm1405, %v1594, %v1593
    %v1596 = vrot.slane %v1398, 5
    %v1597 = vsel %vm1408, %v1596, %v1595
    %v1598 = vrot.slane %v1399, 4
    %v1599 = vsel %vm1411, %v1598, %v1597
    %v1600 = vrot.slane %v1400, 3
    %v1601 = vsel %vm1414, %v1600, %v1599
    %v1602 = vrot.slane %v1449, 2
    %v1603 = vsel %vm1417, %v1602, %v1601
    %v1604 = vrot.slane %v1491, 1
    %v1605 = vsel %vm1420, %v1604, %v1603
    %v1606 = vrot.slane %v1575, 7
    %v1607 = vsel %vm1402, %v1606, %v1533
    %v1608 = vpack.c.b16 %v1591, %v1589
    %v1609 = vpack.c.b16 %v1607, %v1605
    %v1610 = vrot.slane %v1482, 7
    %v1611 = vrot.slane %v1524, 6
    %v1612 = vrot.slane %v1566, 5
    %v1613 = vrot.slane %v1608, 4
    %v1614 = vrot.slane %v1483, 7
    %v1615 = vrot.slane %v1525, 6
    %v1616 = vrot.slane %v1567, 5
    %v1617 = vrot.slane %v1609, 4
    %vm1618 = vcmask 1040384
    %v1621 = vsel %vm1618, %v1440, %v1610
    %v1623 = vsel %vm156, %v1621, %v1611
    %v1626 = vsel %vm1408, %v1612, %v1613
    %vm1627 = vcmask 1042432
    %v1628 = vsel %vm1627, %v1623, %v1626
    %v1629 = vsel %vm1402, %v1440, %v1610
    %vm1630 = vcmask 1042433
    %v1631 = vsel %vm1630, %v1629, %v1611
    %v1632 = vsel %vm1411, %v1612, %v1613
    %vm1633 = vcmask 1043457
    %v1634 = vsel %vm1633, %v1631, %v1632
    %v1636 = vrot.slane %v1634, 1
    %v1637 = vsel %vm1405, %v1440, %v1610
    %v1638 = vsel %vm165, %v1637, %v1611
    %v1639 = vsel %vm1414, %v1612, %v1613
    %vm1640 = vcmask 1044482
    %v1641 = vsel %vm1640, %v1638, %v1639
    %v1643 = vrot.slane %v1641, 2
    %v1644 = vsel %vm1408, %v1440, %v1610
    %vm1645 = vcmask 1044483
    %v1646 = vsel %vm1645, %v1644, %v1611
    %v1647 = vsel %vm1417, %v1612, %v1613
    %vm1648 = vcmask 1045507
    %v1649 = vsel %vm1648, %v1646, %v1647
    %v1651 = vrot.slane %v1649, 3
    %v1652 = vsel %vm1411, %v1440, %v1610
    %v1653 = vsel %vm159, %v1652, %v1611
    %vm1654 = vcmask 1046528
    %v1655 = vsel %vm1654, %v1613, %v1612
    %vm1656 = vcmask 1046532
    %v1657 = vsel %vm1656, %v1653, %v1655
    %v1659 = vrot.slane %v1657, 4
    %v1662 = vsel %vm1618, %v1441, %v1614
    %v1664 = vsel %vm156, %v1662, %v1615
    %v1667 = vsel %vm1408, %v1616, %v1617
    %v1668 = vsel %vm1627, %v1664, %v1667
    %v1669 = vsel %vm1402, %v1441, %v1614
    %v1670 = vsel %vm1630, %v1669, %v1615
    %v1671 = vsel %vm1411, %v1616, %v1617
    %v1672 = vsel %vm1633, %v1670, %v1671
    %v1674 = vrot.slane %v1672, 1
    %v1675 = vsel %vm1405, %v1441, %v1614
    %v1676 = vsel %vm165, %v1675, %v1615
    %v1677 = vsel %vm1414, %v1616, %v1617
    %v1678 = vsel %vm1640, %v1676, %v1677
    %v1680 = vrot.slane %v1678, 2
    %v1681 = vsel %vm1408, %v1441, %v1614
    %v1682 = vsel %vm1645, %v1681, %v1615
    %v1683 = vsel %vm1417, %v1616, %v1617
    %v1684 = vsel %vm1648, %v1682, %v1683
    %v1686 = vrot.slane %v1684, 3
    %v1687 = vsel %vm1411, %v1441, %v1614
    %v1688 = vsel %vm159, %v1687, %v1615
    %v1689 = vsel %vm1654, %v1617, %v1616
    %v1690 = vsel %vm1656, %v1688, %v1689
    %v1692 = vrot.slane %v1690, 4
    %v1693 = vld [vmem:[#allocation2] sm:$0xff]
    %v1694 = vld [vmem:[#allocation2 + $0x8] sm:$0xff]
    %v1695 = vld [vmem:[#allocation2 + $0x10] sm:$0xff]
    %v1696 = vld [vmem:[#allocation2 + $0x18] sm:$0xff]
    %v1697 = vld [vmem:[#allocation2 + $0x20] sm:$0xff]
    %v1698 = vld [vmem:[#allocation2 + $0x28] sm:$0xff]
    %v1699 = vld [vmem:[#allocation2 + $0x30] sm:$0xff]
    %v1700 = vld [vmem:[#allocation2 + $0x38] sm:$0xff]
    %v1701 = vld [vmem:[#allocation2 + $0x40] sm:$0xff]
    %v1702 = vld [vmem:[#allocation2 + $0x48] sm:$0xff]
    %v1703 = vld [vmem:[#allocation2 + $0x50] sm:$0xff]
    %v1704 = vld [vmem:[#allocation2 + $0x58] sm:$0xff]
    %v1705 = vld [vmem:[#allocation2 + $0x60] sm:$0xff]
    %v1706 = vld [vmem:[#allocation2 + $0x68] sm:$0xff]
    %v1707 = vld [vmem:[#allocation2 + $0x70] sm:$0xff]
    %v1708 = vld [vmem:[#allocation2 + $0x78] sm:$0xff]
    %v1709 = vld [vmem:[#allocation2 + $0x80] sm:$0xff]
    %v1710 = vld [vmem:[#allocation2 + $0x88] sm:$0xff]
    %v1711 = vld [vmem:[#allocation2 + $0x90] sm:$0xff]
    %v1712 = vld [vmem:[#allocation2 + $0x98] sm:$0xff]
    %v1713 = vld [vmem:[#allocation2 + $0xa0] sm:$0xff]
    %v1714 = vld [vmem:[#allocation2 + $0xa8] sm:$0xff]
    %v1715 = vld [vmem:[#allocation2 + $0xb0] sm:$0xff]
    %v1716 = vld [vmem:[#allocation2 + $0xb8] sm:$0xff]
    %v1717 = vld [vmem:[#allocation2 + $0xc0] sm:$0xff]
    %v1718 = vld [vmem:[#allocation2 + $0xc8] sm:$0xff]
    %v1719 = vld [vmem:[#allocation2 + $0xd0] sm:$0xff]
    %v1720 = vld [vmem:[#allocation2 + $0xd8] sm:$0xff]
    %v1721 = vld [vmem:[#allocation2 + $0xe0] sm:$0xff]
    %v1722 = vld [vmem:[#allocation2 + $0xe8] sm:$0xff]
    %v1723 = vld [vmem:[#allocation2 + $0xf0] sm:$0xff]
    %v1724 = vld [vmem:[#allocation2 + $0xf8] sm:$0xff]
    %v1725 = vld [vmem:[#allocation2 + $0x100] sm:$0xff]
    %v1726 = vld [vmem:[#allocation2 + $0x108] sm:$0xff]
    %v1727 = vld [vmem:[#allocation2 + $0x110] sm:$0xff]
    %v1728 = vld [vmem:[#allocation2 + $0x118] sm:$0xff]
    %v1729 = vld [vmem:[#allocation2 + $0x120] sm:$0xff]
    %v1730 = vld [vmem:[#allocation2 + $0x128] sm:$0xff]
    %v1731 = vld [vmem:[#allocation2 + $0x130] sm:$0xff]
    %v1732 = vld [vmem:[#allocation2 + $0x138] sm:$0xff]
    %v1733 = vld [vmem:[#allocation2 + $0x140] sm:$0xff]
    %v1734 = vld [vmem:[#allocation2 + $0x148] sm:$0xff]
    %v1735 = vld [vmem:[#allocation2 + $0x150] sm:$0xff]
    %v1736 = vld [vmem:[#allocation2 + $0x158] sm:$0xff]
    %v1737 = vld [vmem:[#allocation2 + $0x160] sm:$0xff]
    %v1738 = vld [vmem:[#allocation2 + $0x168] sm:$0xff]
    %v1739 = vld [vmem:[#allocation2 + $0x170] sm:$0xff]
    %v1740 = vld [vmem:[#allocation2 + $0x178] sm:$0xff]
    %v1741 = vld [vmem:[#allocation2 + $0x180] sm:$0xff]
    %v1742 = vld [vmem:[#allocation2 + $0x188] sm:$0xff]
    %v1743 = vld [vmem:[#allocation2 + $0x190] sm:$0xff]
    %v1744 = vld [vmem:[#allocation2 + $0x198] sm:$0xff]
    %v1745 = vld [vmem:[#allocation2 + $0x1a0] sm:$0xff]
    %v1746 = vld [vmem:[#allocation2 + $0x1a8] sm:$0xff]
    %v1747 = vld [vmem:[#allocation2 + $0x1b0] sm:$0xff]
    %v1748 = vld [vmem:[#allocation2 + $0x1b8] sm:$0xff]
    %v1749 = vld [vmem:[#allocation2 + $0x1c0] sm:$0xff]
    %v1750 = vld [vmem:[#allocation2 + $0x1c8] sm:$0xff]
    %v1751 = vld [vmem:[#allocation2 + $0x1d0] sm:$0xff]
    %v1752 = vld [vmem:[#allocation2 + $0x1d8] sm:$0xff]
    %v1753 = vld [vmem:[#allocation2 + $0x1e0] sm:$0xff]
    %v1754 = vld [vmem:[#allocation2 + $0x1e8] sm:$0xff]
    %v1755 = vld [vmem:[#allocation2 + $0x1f0] sm:$0xff]
    %v1756 = vld [vmem:[#allocation2 + $0x1f8] sm:$0xff]
    %v1757 = vld [vmem:[#allocation2 + $0x200] sm:$0xff]
    %v1758 = vld [vmem:[#allocation2 + $0x208] sm:$0xff]
    %v1759 = vld [vmem:[#allocation2 + $0x210] sm:$0xff]
    %v1760 = vld [vmem:[#allocation2 + $0x218] sm:$0xff]
    %v1761 = vld [vmem:[#allocation2 + $0x220] sm:$0xff]
    %v1762 = vld [vmem:[#allocation2 + $0x228] sm:$0xff]
    %v1763 = vld [vmem:[#allocation2 + $0x230] sm:$0xff]
    %v1764 = vld [vmem:[#allocation2 + $0x238] sm:$0xff]
    %v1765 = vld [vmem:[#allocation2 + $0x240] sm:$0xff]
    %v1766 = vld [vmem:[#allocation2 + $0x248] sm:$0xff]
    %v1767 = vld [vmem:[#allocation2 + $0x250] sm:$0xff]
    %v1768 = vld [vmem:[#allocation2 + $0x258] sm:$0xff]
    %v1769 = vld [vmem:[#allocation2 + $0x260] sm:$0xff]
    %v1770 = vld [vmem:[#allocation2 + $0x268] sm:$0xff]
    %v1771 = vld [vmem:[#allocation2 + $0x270] sm:$0xff]
    %v1772 = vld [vmem:[#allocation2 + $0x278] sm:$0xff]
    %v1773 = vld [vmem:[%s4] sm:$0x3]
    %v1775 = vperm.slane %v1773, 0
    %v1776 = vperm.slane %v1773, 1
    %1779 = vst [vmem:[#allocation1] ss:$9 sm:$0xff] %v1628
    %s1781 = scalar_lea.vmem [#allocation1], 1
    %1782 = vst [vmem:[%s1781] ss:$9 sm:$0xff] %v1636
    %s1784 = scalar_lea.vmem [#allocation1], 2
    %1785 = vst [vmem:[%s1784] ss:$9 sm:$0xff] %v1643
    %s1787 = scalar_lea.vmem [#allocation1], 3
    %1788 = vst [vmem:[%s1787] ss:$9 sm:$0xff] %v1651
    %s1790 = scalar_lea.vmem [#allocation1], 4
    %1791 = vst [vmem:[%s1790] ss:$9 sm:$0xff] %v1659
    %s1792 = scalar_lea.vmem [#allocation1], 5
    %1793 = vst [vmem:[%s1792] ss:$9 sm:$0xff] %v1668
    %s1795 = scalar_lea.vmem [#allocation1], 6
    %1796 = vst [vmem:[%s1795] ss:$9 sm:$0xff] %v1674
    %s1798 = scalar_lea.vmem [#allocation1], 7
    %1799 = vst [vmem:[%s1798] ss:$9 sm:$0xff] %v1680
    %v1800 = vld [vmem:[#allocation1] sm:$0xff]
    %v1801 = vld [vmem:[#allocation1 + $0x9] sm:$0xff]
    %v1802 = vld [vmem:[#allocation1 + $0x12] sm:$0xff]
    %v1803 = vld [vmem:[#allocation1 + $0x1b] sm:$0xff]
    %v1804 = vld [vmem:[#allocation1 + $0x24] sm:$0xff]
    %1806 = vst [vmem:[#allocation1] ss:$9 sm:$0xff] %v1686
    %1808 = vst [vmem:[%s1781] ss:$9 sm:$0xff] %v1692
    %v1809 = vld [vmem:[#allocation1] sm:$0xff]
    %v1810 = vld [vmem:[#allocation1 + $0x9] sm:$0xff]
    %v1811 = vld [vmem:[#allocation1 + $0x12] sm:$0xff]
    %v1812 = vld [vmem:[#allocation1 + $0x1b] sm:$0xff]
    %v1813 = vld [vmem:[#allocation1 + $0x24] sm:$0xff]
    %v1904 = vunpack.c.l.b16 %v1693
    %v1905 = vunpack.c.h.b16 %v1693
    %v1906 = vunpack.c.l.b16 %v1694
    %v1907 = vunpack.c.h.b16 %v1694
    %v1908 = vunpack.c.l.b16 %v1695
    %v1909 = vunpack.c.h.b16 %v1695
    %v1910 = vunpack.c.l.b16 %v1696
    %v1911 = vunpack.c.h.b16 %v1696
    %v1912 = vunpack.c.l.b16 %v1697
    %v1913 = vunpack.c.h.b16 %v1697
    %v1914 = vunpack.c.l.b16 %v1698
    %v1915 = vunpack.c.h.b16 %v1698
    %v1916 = vunpack.c.l.b16 %v1699
    %v1917 = vunpack.c.h.b16 %v1699
    %v1918 = vunpack.c.l.b16 %v1700
    %v1919 = vunpack.c.h.b16 %v1700
    %v1920 = vunpack.c.l.b16 %v1701
    %v1921 = vunpack.c.h.b16 %v1701
    %v1922 = vunpack.c.l.b16 %v1702
    %v1923 = vunpack.c.h.b16 %v1702
    %v1924 = vunpack.c.l.b16 %v1703
    %v1925 = vunpack.c.h.b16 %v1703
    %v1926 = vunpack.c.l.b16 %v1704
    %v1927 = vunpack.c.h.b16 %v1704
    %v1928 = vunpack.c.l.b16 %v1705
    %v1929 = vunpack.c.h.b16 %v1705
    %v1930 = vunpack.c.l.b16 %v1706
    %v1931 = vunpack.c.h.b16 %v1706
    %v1932 = vunpack.c.l.b16 %v1707
    %v1933 = vunpack.c.h.b16 %v1707
    %v1934 = vunpack.c.l.b16 %v1708
    %v1935 = vunpack.c.h.b16 %v1708
    %v1936 = vunpack.c.l.b16 %v1709
    %v1937 = vunpack.c.h.b16 %v1709
    %v1938 = vunpack.c.l.b16 %v1710
    %v1939 = vunpack.c.h.b16 %v1710
    %v1940 = vunpack.c.l.b16 %v1711
    %v1941 = vunpack.c.h.b16 %v1711
    %v1942 = vunpack.c.l.b16 %v1712
    %v1943 = vunpack.c.h.b16 %v1712
    %v1944 = vunpack.c.l.b16 %v1713
    %v1945 = vunpack.c.h.b16 %v1713
    %v1946 = vunpack.c.l.b16 %v1714
    %v1947 = vunpack.c.h.b16 %v1714
    %v1948 = vunpack.c.l.b16 %v1715
    %v1949 = vunpack.c.h.b16 %v1715
    %v1950 = vunpack.c.l.b16 %v1716
    %v1951 = vunpack.c.h.b16 %v1716
    %v1952 = vunpack.c.l.b16 %v1717
    %v1953 = vunpack.c.h.b16 %v1717
    %v1954 = vunpack.c.l.b16 %v1718
    %v1955 = vunpack.c.h.b16 %v1718
    %v1956 = vunpack.c.l.b16 %v1719
    %v1957 = vunpack.c.h.b16 %v1719
    %v1958 = vunpack.c.l.b16 %v1720
    %v1959 = vunpack.c.h.b16 %v1720
    %v1960 = vunpack.c.l.b16 %v1721
    %v1961 = vunpack.c.h.b16 %v1721
    %v1962 = vunpack.c.l.b16 %v1722
    %v1963 = vunpack.c.h.b16 %v1722
    %v1964 = vunpack.c.l.b16 %v1723
    %v1965 = vunpack.c.h.b16 %v1723
    %v1966 = vunpack.c.l.b16 %v1724
    %v1967 = vunpack.c.h.b16 %v1724
    %v1968 = vunpack.c.l.b16 %v1725
    %v1969 = vunpack.c.h.b16 %v1725
    %v1970 = vunpack.c.l.b16 %v1726
    %v1971 = vunpack.c.h.b16 %v1726
    %v1972 = vunpack.c.l.b16 %v1727
    %v1973 = vunpack.c.h.b16 %v1727
    %v1974 = vunpack.c.l.b16 %v1728
    %v1975 = vunpack.c.h.b16 %v1728
    %v1976 = vunpack.c.l.b16 %v1729
    %v1977 = vunpack.c.h.b16 %v1729
    %v1978 = vunpack.c.l.b16 %v1730
    %v1979 = vunpack.c.h.b16 %v1730
    %v1980 = vunpack.c.l.b16 %v1731
    %v1981 = vunpack.c.h.b16 %v1731
    %v1982 = vunpack.c.l.b16 %v1732
    %v1983 = vunpack.c.h.b16 %v1732
    %v1984 = vunpack.c.l.b16 %v1733
    %v1985 = vunpack.c.h.b16 %v1733
    %v1986 = vunpack.c.l.b16 %v1734
    %v1987 = vunpack.c.h.b16 %v1734
    %v1988 = vunpack.c.l.b16 %v1735
    %v1989 = vunpack.c.h.b16 %v1735
    %v1990 = vunpack.c.l.b16 %v1736
    %v1991 = vunpack.c.h.b16 %v1736
    %v1992 = vunpack.c.l.b16 %v1737
    %v1993 = vunpack.c.h.b16 %v1737
    %v1994 = vunpack.c.l.b16 %v1738
    %v1995 = vunpack.c.h.b16 %v1738
    %v1996 = vunpack.c.l.b16 %v1739
    %v1997 = vunpack.c.h.b16 %v1739
    %v1998 = vunpack.c.l.b16 %v1740
    %v1999 = vunpack.c.h.b16 %v1740
    %v2000 = vunpack.c.l.b16 %v1741
    %v2001 = vunpack.c.h.b16 %v1741
    %v2002 = vunpack.c.l.b16 %v1742
    %v2003 = vunpack.c.h.b16 %v1742
    %v2004 = vunpack.c.l.b16 %v1743
    %v2005 = vunpack.c.h.b16 %v1743
    %v2006 = vunpack.c.l.b16 %v1744
    %v2007 = vunpack.c.h.b16 %v1744
    %v2008 = vunpack.c.l.b16 %v1745
    %v2009 = vunpack.c.h.b16 %v1745
    %v2010 = vunpack.c.l.b16 %v1746
    %v2011 = vunpack.c.h.b16 %v1746
    %v2012 = vunpack.c.l.b16 %v1747
    %v2013 = vunpack.c.h.b16 %v1747
    %v2014 = vunpack.c.l.b16 %v1748
    %v2015 = vunpack.c.h.b16 %v1748
    %v2016 = vunpack.c.l.b16 %v1749
    %v2017 = vunpack.c.h.b16 %v1749
    %v2018 = vunpack.c.l.b16 %v1750
    %v2019 = vunpack.c.h.b16 %v1750
    %v2020 = vunpack.c.l.b16 %v1751
    %v2021 = vunpack.c.h.b16 %v1751
    %v2022 = vunpack.c.l.b16 %v1752
    %v2023 = vunpack.c.h.b16 %v1752
    %v2024 = vunpack.c.l.b16 %v1753
    %v2025 = vunpack.c.h.b16 %v1753
    %v2026 = vunpack.c.l.b16 %v1754
    %v2027 = vunpack.c.h.b16 %v1754
    %v2028 = vunpack.c.l.b16 %v1755
    %v2029 = vunpack.c.h.b16 %v1755
    %v2030 = vunpack.c.l.b16 %v1756
    %v2031 = vunpack.c.h.b16 %v1756
    %v2032 = vunpack.c.l.b16 %v1757
    %v2033 = vunpack.c.h.b16 %v1757
    %v2034 = vunpack.c.l.b16 %v1758
    %v2035 = vunpack.c.h.b16 %v1758
    %v2036 = vunpack.c.l.b16 %v1759
    %v2037 = vunpack.c.h.b16 %v1759
    %v2038 = vunpack.c.l.b16 %v1760
    %v2039 = vunpack.c.h.b16 %v1760
    %v2040 = vunpack.c.l.b16 %v1761
    %v2041 = vunpack.c.h.b16 %v1761
    %v2042 = vunpack.c.l.b16 %v1762
    %v2043 = vunpack.c.h.b16 %v1762
    %v2044 = vunpack.c.l.b16 %v1763
    %v2045 = vunpack.c.h.b16 %v1763
    %v2046 = vunpack.c.l.b16 %v1764
    %v2047 = vunpack.c.h.b16 %v1764
    %v2048 = vunpack.c.l.b16 %v1765
    %v2049 = vunpack.c.h.b16 %v1765
    %v2050 = vunpack.c.l.b16 %v1766
    %v2051 = vunpack.c.h.b16 %v1766
    %v2052 = vunpack.c.l.b16 %v1767
    %v2053 = vunpack.c.h.b16 %v1767
    %v2054 = vunpack.c.l.b16 %v1768
    %v2055 = vunpack.c.h.b16 %v1768
    %v2056 = vunpack.c.l.b16 %v1769
    %v2057 = vunpack.c.h.b16 %v1769
    %v2058 = vunpack.c.l.b16 %v1770
    %v2059 = vunpack.c.h.b16 %v1770
    %v2060 = vunpack.c.l.b16 %v1771
    %v2061 = vunpack.c.h.b16 %v1771
    %v2062 = vunpack.c.l.b16 %v1772
    %v2063 = vunpack.c.h.b16 %v1772
    %v2064 = vpack.c.b16 %v1906, %v1904
    %v2065 = vpack.c.b16 %v1907, %v1905
    %v2066 = vpack.c.b16 %v1910, %v1908
    %v2067 = vpack.c.b16 %v1911, %v1909
    %v2068 = vpack.c.b16 %v1914, %v1912
    %v2069 = vpack.c.b16 %v1915, %v1913
    %v2070 = vpack.c.b16 %v1918, %v1916
    %v2071 = vpack.c.b16 %v1919, %v1917
    %v2072 = vpack.c.b16 %v1922, %v1920
    %v2073 = vpack.c.b16 %v1923, %v1921
    %v2074 = vpack.c.b16 %v1926, %v1924
    %v2075 = vpack.c.b16 %v1927, %v1925
    %v2076 = vpack.c.b16 %v1930, %v1928
    %v2077 = vpack.c.b16 %v1931, %v1929
    %v2078 = vpack.c.b16 %v1934, %v1932
    %v2079 = vpack.c.b16 %v1935, %v1933
    %v2080 = vpack.c.b16 %v1938, %v1936
    %v2081 = vpack.c.b16 %v1939, %v1937
    %v2082 = vpack.c.b16 %v1942, %v1940
    %v2083 = vpack.c.b16 %v1943, %v1941
    %v2084 = vpack.c.b16 %v1946, %v1944
    %v2085 = vpack.c.b16 %v1947, %v1945
    %v2086 = vpack.c.b16 %v1950, %v1948
    %v2087 = vpack.c.b16 %v1951, %v1949
    %v2088 = vpack.c.b16 %v1954, %v1952
    %v2089 = vpack.c.b16 %v1955, %v1953
    %v2090 = vpack.c.b16 %v1958, %v1956
    %v2091 = vpack.c.b16 %v1959, %v1957
    %v2092 = vpack.c.b16 %v1962, %v1960
    %v2093 = vpack.c.b16 %v1963, %v1961
    %v2094 = vpack.c.b16 %v1966, %v1964
    %v2095 = vpack.c.b16 %v1967, %v1965
    %v2096 = vpack.c.b16 %v1970, %v1968
    %v2097 = vpack.c.b16 %v1971, %v1969
    %v2098 = vpack.c.b16 %v1974, %v1972
    %v2099 = vpack.c.b16 %v1975, %v1973
    %v2100 = vpack.c.b16 %v1978, %v1976
    %v2101 = vpack.c.b16 %v1979, %v1977
    %v2102 = vpack.c.b16 %v1982, %v1980
    %v2103 = vpack.c.b16 %v1983, %v1981
    %v2104 = vpack.c.b16 %v1986, %v1984
    %v2105 = vpack.c.b16 %v1987, %v1985
    %v2106 = vpack.c.b16 %v1990, %v1988
    %v2107 = vpack.c.b16 %v1991, %v1989
    %v2108 = vpack.c.b16 %v1994, %v1992
    %v2109 = vpack.c.b16 %v1995, %v1993
    %v2110 = vpack.c.b16 %v1998, %v1996
    %v2111 = vpack.c.b16 %v1999, %v1997
    %v2112 = vpack.c.b16 %v2002, %v2000
    %v2113 = vpack.c.b16 %v2003, %v2001
    %v2114 = vpack.c.b16 %v2006, %v2004
    %v2115 = vpack.c.b16 %v2007, %v2005
    %v2116 = vpack.c.b16 %v2010, %v2008
    %v2117 = vpack.c.b16 %v2011, %v2009
    %v2118 = vpack.c.b16 %v2014, %v2012
    %v2119 = vpack.c.b16 %v2015, %v2013
    %v2120 = vpack.c.b16 %v2018, %v2016
    %v2121 = vpack.c.b16 %v2019, %v2017
    %v2122 = vpack.c.b16 %v2022, %v2020
    %v2123 = vpack.c.b16 %v2023, %v2021
    %v2124 = vpack.c.b16 %v2026, %v2024
    %v2125 = vpack.c.b16 %v2027, %v2025
    %v2126 = vpack.c.b16 %v2030, %v2028
    %v2127 = vpack.c.b16 %v2031, %v2029
    %v2128 = vpack.c.b16 %v2034, %v2032
    %v2129 = vpack.c.b16 %v2035, %v2033
    %v2130 = vpack.c.b16 %v2038, %v2036
    %v2131 = vpack.c.b16 %v2039, %v2037
    %v2132 = vpack.c.b16 %v2042, %v2040
    %v2133 = vpack.c.b16 %v2043, %v2041
    %v2134 = vpack.c.b16 %v2046, %v2044
    %v2135 = vpack.c.b16 %v2047, %v2045
    %v2136 = vpack.c.b16 %v2050, %v2048
    %v2137 = vpack.c.b16 %v2051, %v2049
    %v2138 = vpack.c.b16 %v2054, %v2052
    %v2139 = vpack.c.b16 %v2055, %v2053
    %v2140 = vpack.c.b16 %v2058, %v2056
    %v2141 = vpack.c.b16 %v2059, %v2057
    %v2142 = vpack.c.b16 %v2062, %v2060
    %v2143 = vpack.c.b16 %v2063, %v2061
    %2224 = vmatpush.bf16.msra.mxu0 %v2078
    %2225 = vmatpush.bf16.msra.mxu0 %v2076
    %2226 = vmatpush.bf16.msra.mxu0 %v2074
    %2227 = vmatpush.bf16.msra.mxu0 %v2072
    %2228 = vmatpush.bf16.msra.mxu0 %v2070
    %2229 = vmatpush.bf16.msra.mxu0 %v2068
    %2230 = vmatpush.bf16.msra.mxu0 %v2066
    %2231 = vmatpush.bf16.msra.mxu0 %v2064
    %2232 = vmatmul.bf16.gmra.mxu0 %v1800
    %v2233 = vpop.f32.mrf.mxu0
    %v2234 = vadd.f32 %v1775, %v2233
    %v2235 = vpop.f32.mrf.mxu0
    %v2236 = vadd.f32 %v1775, %v2235
    %2237 = vmatmul.bf16.gmra.mxu0 %v1809
    %v2238 = vpop.f32.mrf.mxu0
    %v2239 = vadd.f32 %v1775, %v2238
    %v2240 = vpop.f32.mrf.mxu0
    %2241 = vdwg.mxu0
    %2242 = vmatpush.bf16.msra.mxu0 %v2094
    %2243 = vmatpush.bf16.msra.mxu0 %v2092
    %2244 = vmatpush.bf16.msra.mxu0 %v2090
    %2245 = vmatpush.bf16.msra.mxu0 %v2088
    %2246 = vmatpush.bf16.msra.mxu0 %v2086
    %2247 = vmatpush.bf16.msra.mxu0 %v2084
    %2248 = vmatpush.bf16.msra.mxu0 %v2082
    %2249 = vmatpush.bf16.msra.mxu0 %v2080
    %2250 = vmatmul.bf16.gmra.mxu0 %v1801
    %v2251 = vpop.f32.mrf.mxu0
    %v2252 = vadd.f32 %v2234, %v2251
    %v2253 = vpop.f32.mrf.mxu0
    %v2254 = vadd.f32 %v2236, %v2253
    %2255 = vmatmul.bf16.gmra.mxu0 %v1810
    %v2256 = vpop.f32.mrf.mxu0
    %v2257 = vadd.f32 %v2239, %v2256
    %v2258 = vpop.f32.mrf.mxu0
    %2259 = vdwg.mxu0
    %2260 = vmatpush.bf16.msra.mxu0 %v2110
    %2261 = vmatpush.bf16.msra.mxu0 %v2108
    %2262 = vmatpush.bf16.msra.mxu0 %v2106
    %2263 = vmatpush.bf16.msra.mxu0 %v2104
    %2264 = vmatpush.bf16.msra.mxu0 %v2102
    %2265 = vmatpush.bf16.msra.mxu0 %v2100
    %2266 = vmatpush.bf16.msra.mxu0 %v2098
    %2267 = vmatpush.bf16.msra.mxu0 %v2096
    %2268 = vmatmul.bf16.gmra.mxu0 %v1802
    %v2269 = vpop.f32.mrf.mxu0
    %v2270 = vadd.f32 %v2252, %v2269
    %v2271 = vpop.f32.mrf.mxu0
    %v2272 = vadd.f32 %v2254, %v2271
    %2273 = vmatmul.bf16.gmra.mxu0 %v1811
    %v2274 = vpop.f32.mrf.mxu0
    %v2275 = vadd.f32 %v2257, %v2274
    %v2276 = vpop.f32.mrf.mxu0
    %2277 = vdwg.mxu0
    %2278 = vmatpush.bf16.msra.mxu0 %v2126
    %2279 = vmatpush.bf16.msra.mxu0 %v2124
    %2280 = vmatpush.bf16.msra.mxu0 %v2122
    %2281 = vmatpush.bf16.msra.mxu0 %v2120
    %2282 = vmatpush.bf16.msra.mxu0 %v2118
    %2283 = vmatpush.bf16.msra.mxu0 %v2116
    %2284 = vmatpush.bf16.msra.mxu0 %v2114
    %2285 = vmatpush.bf16.msra.mxu0 %v2112
    %2286 = vmatmul.bf16.gmra.mxu0 %v1803
    %v2287 = vpop.f32.mrf.mxu0
    %v2288 = vadd.f32 %v2270, %v2287
    %v2289 = vpop.f32.mrf.mxu0
    %v2290 = vadd.f32 %v2272, %v2289
    %2291 = vmatmul.bf16.gmra.mxu0 %v1812
    %v2292 = vpop.f32.mrf.mxu0
    %v2293 = vadd.f32 %v2275, %v2292
    %v2294 = vpop.f32.mrf.mxu0
    %2295 = vdwg.mxu0
    %2296 = vmatpush.bf16.msra.mxu0 %v2142
    %2297 = vmatpush.bf16.msra.mxu0 %v2140
    %2298 = vmatpush.bf16.msra.mxu0 %v2138
    %2299 = vmatpush.bf16.msra.mxu0 %v2136
    %2300 = vmatpush.bf16.msra.mxu0 %v2134
    %2301 = vmatpush.bf16.msra.mxu0 %v2132
    %2302 = vmatpush.bf16.msra.mxu0 %v2130
    %2303 = vmatpush.bf16.msra.mxu0 %v2128
    %2304 = vmatmul.bf16.gmra.mxu0 %v1804
    %v2305 = vpop.f32.mrf.mxu0
    %v2306 = vadd.f32 %v2288, %v2305
    %v2307 = vpop.f32.mrf.mxu0
    %v2308 = vadd.f32 %v2290, %v2307
    %2309 = vmatmul.bf16.gmra.mxu0 %v1813
    %v2310 = vpop.f32.mrf.mxu0
    %v2311 = vadd.f32 %v2293, %v2310
    %v2312 = vpop.f32.mrf.mxu0
    %2313 = vdwg.mxu0
    %2314 = vmatpush.bf16.msra.mxu0 %v2079
    %2315 = vmatpush.bf16.msra.mxu0 %v2077
    %2316 = vmatpush.bf16.msra.mxu0 %v2075
    %2317 = vmatpush.bf16.msra.mxu0 %v2073
    %2318 = vmatpush.bf16.msra.mxu0 %v2071
    %2319 = vmatpush.bf16.msra.mxu0 %v2069
    %2320 = vmatpush.bf16.msra.mxu0 %v2067
    %2321 = vmatpush.bf16.msra.mxu0 %v2065
    %2322 = vmatmul.bf16.gmra.mxu0 %v1800
    %v2323 = vpop.f32.mrf.mxu0
    %v2324 = vadd.f32 %v1776, %v2323
    %v2325 = vpop.f32.mrf.mxu0
    %v2326 = vadd.f32 %v1776, %v2325
    %2327 = vmatmul.bf16.gmra.mxu0 %v1809
    %v2328 = vpop.f32.mrf.mxu0
    %v2329 = vadd.f32 %v1776, %v2328
    %v2330 = vpop.f32.mrf.mxu0
    %2331 = vdwg.mxu0
    %2332 = vmatpush.bf16.msra.mxu0 %v2095
    %2333 = vmatpush.bf16.msra.mxu0 %v2093
    %2334 = vmatpush.bf16.msra.mxu0 %v2091
    %2335 = vmatpush.bf16.msra.mxu0 %v2089
    %2336 = vmatpush.bf16.msra.mxu0 %v2087
    %2337 = vmatpush.bf16.msra.mxu0 %v2085
    %2338 = vmatpush.bf16.msra.mxu0 %v2083
    %2339 = vmatpush.bf16.msra.mxu0 %v2081
    %2340 = vmatmul.bf16.gmra.mxu0 %v1801
    %v2341 = vpop.f32.mrf.mxu0
    %v2342 = vadd.f32 %v2324, %v2341
    %v2343 = vpop.f32.mrf.mxu0
    %v2344 = vadd.f32 %v2326, %v2343
    %2345 = vmatmul.bf16.gmra.mxu0 %v1810
    %v2346 = vpop.f32.mrf.mxu0
    %v2347 = vadd.f32 %v2329, %v2346
    %v2348 = vpop.f32.mrf.mxu0
    %2349 = vdwg.mxu0
    %2350 = vmatpush.bf16.msra.mxu0 %v2111
    %2351 = vmatpush.bf16.msra.mxu0 %v2109
    %2352 = vmatpush.bf16.msra.mxu0 %v2107
    %2353 = vmatpush.bf16.msra.mxu0 %v2105
    %2354 = vmatpush.bf16.msra.mxu0 %v2103
    %2355 = vmatpush.bf16.msra.mxu0 %v2101
    %2356 = vmatpush.bf16.msra.mxu0 %v2099
    %2357 = vmatpush.bf16.msra.mxu0 %v2097
    %2358 = vmatmul.bf16.gmra.mxu0 %v1802
    %v2359 = vpop.f32.mrf.mxu0
    %v2360 = vadd.f32 %v2342, %v2359
    %v2361 = vpop.f32.mrf.mxu0
    %v2362 = vadd.f32 %v2344, %v2361
    %2363 = vmatmul.bf16.gmra.mxu0 %v1811
    %v2364 = vpop.f32.mrf.mxu0
    %v2365 = vadd.f32 %v2347, %v2364
    %v2366 = vpop.f32.mrf.mxu0
    %2367 = vdwg.mxu0
    %2368 = vmatpush.bf16.msra.mxu0 %v2127
    %2369 = vmatpush.bf16.msra.mxu0 %v2125
    %2370 = vmatpush.bf16.msra.mxu0 %v2123
    %2371 = vmatpush.bf16.msra.mxu0 %v2121
    %2372 = vmatpush.bf16.msra.mxu0 %v2119
    %2373 = vmatpush.bf16.msra.mxu0 %v2117
    %2374 = vmatpush.bf16.msra.mxu0 %v2115
    %2375 = vmatpush.bf16.msra.mxu0 %v2113
    %2376 = vmatmul.bf16.gmra.mxu0 %v1803
    %v2377 = vpop.f32.mrf.mxu0
    %v2378 = vadd.f32 %v2360, %v2377
    %v2379 = vpop.f32.mrf.mxu0
    %v2380 = vadd.f32 %v2362, %v2379
    %2381 = vmatmul.bf16.gmra.mxu0 %v1812
    %v2382 = vpop.f32.mrf.mxu0
    %v2383 = vadd.f32 %v2365, %v2382
    %v2384 = vpop.f32.mrf.mxu0
    %2385 = vdwg.mxu0
    %2386 = vmatpush.bf16.msra.mxu0 %v2143
    %2387 = vmatpush.bf16.msra.mxu0 %v2141
    %2388 = vmatpush.bf16.msra.mxu0 %v2139
    %2389 = vmatpush.bf16.msra.mxu0 %v2137
    %2390 = vmatpush.bf16.msra.mxu0 %v2135
    %2391 = vmatpush.bf16.msra.mxu0 %v2133
    %2392 = vmatpush.bf16.msra.mxu0 %v2131
    %2393 = vmatpush.bf16.msra.mxu0 %v2129
    %2394 = vmatmul.bf16.gmra.mxu0 %v1804
    %v2395 = vpop.f32.mrf.mxu0
    %v2396 = vadd.f32 %v2378, %v2395
    %v2397 = vpop.f32.mrf.mxu0
    %v2398 = vadd.f32 %v2380, %v2397
    %2399 = vmatmul.bf16.gmra.mxu0 %v1813
    %v2400 = vpop.f32.mrf.mxu0
    %v2401 = vadd.f32 %v2383, %v2400
    %v2402 = vpop.f32.mrf.mxu0
    %2403 = vdwg.mxu0
    %v2404 = vmax.f32 %v2306, 0.0
    %v2405 = vmax.f32 %v2396, 0.0
    %v2406 = vmax.f32 %v2308, 0.0
    %v2407 = vmax.f32 %v2398, 0.0
    %v2408 = vmax.f32 %v2311, 0.0
    %v2409 = vmax.f32 %v2401, 0.0
    %v2410 = vmax.f32 %v2404, %v2405
    %v2411 = vmax.f32 %v2406, %v2407
    %v2412 = vmax.f32 %v2408, %v2409
    %v2416 = vrot.slane %v2410, 2
    %v2417 = vrot.slane %v2410, 4
    %v2418 = vrot.slane %v2410, 6
    %v2419 = vrot.slane %v2411, 2
    %v2420 = vrot.slane %v2411, 4
    %v2421 = vrot.slane %v2411, 6
    %v2422 = vrot.slane %v2412, 2
    %v2430 = vrot.slane %v2410, 7
    %v2431 = vrot.slane %v2430, 2
    %v2432 = vrot.slane %v2416, 7
    %v2433 = vrot.slane %v2432, 2
    %v2434 = vrot.slane %v2417, 7
    %v2435 = vrot.slane %v2434, 2
    %v2436 = vrot.slane %v2418, 7
    %v2437 = vrot.slane %v2436, 2
    %v2438 = vrot.slane %v2411, 7
    %v2439 = vrot.slane %v2438, 2
    %v2440 = vrot.slane %v2419, 7
    %v2441 = vrot.slane %v2440, 2
    %v2442 = vrot.slane %v2420, 7
    %v2443 = vrot.slane %v2442, 2
    %v2444 = vrot.slane %v2421, 7
    %v2445 = vrot.slane %v2444, 2
    %v2446 = vrot.slane %v2412, 7
    %v2447 = vrot.slane %v2446, 2
    %v2448 = vrot.slane %v2422, 7
    %v2449 = vrot.slane %v2448, 2
    %v2460 = vmax.f32 %v2410, %v2431
    %v2461 = vmax.f32 %v2416, %v2433
    %v2462 = vmax.f32 %v2417, %v2435
    %v2463 = vmax.f32 %v2418, %v2437
    %v2464 = vmax.f32 %v2411, %v2439
    %v2465 = vmax.f32 %v2419, %v2441
    %v2466 = vmax.f32 %v2420, %v2443
    %v2467 = vmax.f32 %v2421, %v2445
    %v2468 = vmax.f32 %v2412, %v2447
    %v2469 = vmax.f32 %v2422, %v2449
    %v2480 = vsel %vm1411, %v2460, %v2460
    %v2481 = vsel %vm1417, %v2460, %v2480
    %v2482 = vrot.slane %v2461, 7
    %v2483 = vsel %vm1402, %v2482, %v2481
    %v2484 = vsel %vm1408, %v2482, %v2483
    %v2485 = vsel %vm1414, %v2482, %v2484
    %v2486 = vsel %vm1420, %v2482, %v2485
    %v2487 = vsel %vm1411, %v2462, %v2462
    %v2488 = vsel %vm1417, %v2462, %v2487
    %v2489 = vrot.slane %v2463, 7
    %v2490 = vsel %vm1402, %v2489, %v2488
    %v2491 = vsel %vm1408, %v2489, %v2490
    %v2492 = vsel %vm1414, %v2489, %v2491
    %v2493 = vsel %vm1420, %v2489, %v2492
    %v2494 = vsel %vm1411, %v2464, %v2464
    %v2495 = vsel %vm1417, %v2464, %v2494
    %v2496 = vsel %vm1411, %v2465, %v2465
    %v2497 = vsel %vm1417, %v2465, %v2496
    %v2498 = vrot.slane %v2466, 7
    %v2499 = vsel %vm1402, %v2498, %v2497
    %v2500 = vsel %vm1408, %v2498, %v2499
    %v2501 = vsel %vm1414, %v2498, %v2500
    %v2502 = vsel %vm1420, %v2498, %v2501
    %v2503 = vsel %vm1411, %v2467, %v2467
    %v2504 = vsel %vm1417, %v2467, %v2503
    %v2505 = vrot.slane %v2468, 7
    %v2506 = vsel %vm1402, %v2505, %v2504
    %v2507 = vsel %vm1408, %v2505, %v2506
    %v2508 = vsel %vm1414, %v2505, %v2507
    %v2509 = vsel %vm1420, %v2505, %v2508
    %v2510 = vsel %vm1411, %v2469, %v2469
    %v2511 = vsel %vm1417, %v2469, %v2510
    %v2518 = vrot.slane %v2502, 4
    %vm2519 = vcmask 1047556
    %v2520 = vsel %vm2519, %v2518, %v2486
    %v2522 = vunpack.c.l.s4 1934713408
    %v2523 = vunpack.c.0.s8 %v2522
    %v2524 = vperm.slane %v2520, %v2523
    %v2525 = vrot.slane %v2524, 4
    %v2526 = vsel %vm2519, 0.0, %v2525
    %v2527 = vrot.slane %v2509, 4
    %v2528 = vsel %vm2519, %v2527, %v2493
    %v2530 = vunpack.c.l.s4 1934713408
    %v2531 = vunpack.c.0.s8 %v2530
    %v2532 = vperm.slane %v2528, %v2531
    %v2533 = vrot.slane %v2532, 4
    %v2534 = vsel %vm2519, 0.0, %v2533
    %v2535 = vrot.slane %v2511, 4
    %v2536 = vsel %vm2519, %v2535, %v2495
    %v2538 = vunpack.c.l.s4 1934713408
    %v2539 = vunpack.c.0.s8 %v2538
    %v2540 = vperm.slane %v2536, %v2539
    %v2541 = vpack.c.bf16 %v2524, %v2524
    %v2542 = vpack.c.bf16 %v2526, %v2526
    %v2543 = vpack.c.bf16 %v2532, %v2532
    %v2544 = vpack.c.bf16 %v2534, %v2534
    %v2545 = vpack.c.bf16 %v2540, %v2540
    %v2546 = vld [vmem:[%s5] sm:$0xf]
    %v2547 = vld [vmem:[%s5 + $0x4] sm:$0xf]
    %v2548 = vld [vmem:[%s5 + $0x8] sm:$0xf]
    %v2549 = vld [vmem:[%s5 + $0xc] sm:$0xf]
    %v2550 = vld [vmem:[%s5 + $0x10] sm:$0xf]
    %v2551 = vld [vmem:[%s5 + $0x14] sm:$0xf]
    %v2552 = vld [vmem:[%s5 + $0x18] sm:$0xf]
    %v2553 = vld [vmem:[%s5 + $0x1c] sm:$0xf]
    %v2554 = vld [vmem:[%s5 + $0x20] sm:$0xf]
    %v2555 = vld [vmem:[%s5 + $0x24] sm:$0xf]
    %v2556 = vld [vmem:[%s5 + $0x28] sm:$0xf]
    %v2557 = vld [vmem:[%s5 + $0x2c] sm:$0xf]
    %v2558 = vld [vmem:[%s5 + $0x30] sm:$0xf]
    %v2559 = vld [vmem:[%s5 + $0x34] sm:$0xf]
    %v2560 = vld [vmem:[%s5 + $0x38] sm:$0xf]
    %v2561 = vld [vmem:[%s5 + $0x3c] sm:$0xf]
    %v2562 = vld [vmem:[%s5 + $0x40] sm:$0xf]
    %v2563 = vld [vmem:[%s5 + $0x44] sm:$0xf]
    %v2564 = vld [vmem:[%s5 + $0x48] sm:$0xf]
    %v2565 = vld [vmem:[%s5 + $0x4c] sm:$0xf]
    %v2566 = vld [vmem:[%s5 + $0x50] sm:$0xf]
    %v2567 = vld [vmem:[%s5 + $0x54] sm:$0xf]
    %v2568 = vld [vmem:[%s5 + $0x58] sm:$0xf]
    %v2569 = vld [vmem:[%s5 + $0x5c] sm:$0xf]
    %v2570 = vld [vmem:[%s5 + $0x60] sm:$0xf]
    %v2571 = vld [vmem:[%s5 + $0x64] sm:$0xf]
    %v2572 = vld [vmem:[%s5 + $0x68] sm:$0xf]
    %v2573 = vld [vmem:[%s5 + $0x6c] sm:$0xf]
    %v2574 = vld [vmem:[%s5 + $0x70] sm:$0xf]
    %v2575 = vld [vmem:[%s5 + $0x74] sm:$0xf]
    %v2576 = vld [vmem:[%s5 + $0x78] sm:$0xf]
    %v2577 = vld [vmem:[%s5 + $0x7c] sm:$0xf]
    %v2578 = vld [vmem:[%s5 + $0x80] sm:$0xf]
    %v2579 = vld [vmem:[%s5 + $0x84] sm:$0xf]
    %v2580 = vld [vmem:[%s5 + $0x88] sm:$0xf]
    %v2581 = vld [vmem:[%s5 + $0x8c] sm:$0xf]
    %v2582 = vld [vmem:[%s5 + $0x90] sm:$0xf]
    %v2583 = vld [vmem:[%s5 + $0x94] sm:$0xf]
    %v2584 = vld [vmem:[%s5 + $0x98] sm:$0xf]
    %v2585 = vld [vmem:[%s5 + $0x9c] sm:$0xf]
    %v2586 = vld [vmem:[%s5 + $0xa0] sm:$0xf]
    %v2587 = vld [vmem:[%s5 + $0xa4] sm:$0xf]
    %v2588 = vld [vmem:[%s5 + $0xa8] sm:$0xf]
    %v2589 = vld [vmem:[%s5 + $0xac] sm:$0xf]
    %v2590 = vld [vmem:[%s5 + $0xb0] sm:$0xf]
    %v2591 = vld [vmem:[%s5 + $0xb4] sm:$0xf]
    %v2592 = vld [vmem:[%s5 + $0xb8] sm:$0xf]
    %v2593 = vld [vmem:[%s5 + $0xbc] sm:$0xf]
    %v2594 = vld [vmem:[%s5 + $0xc0] sm:$0xf]
    %v2595 = vld [vmem:[%s5 + $0xc4] sm:$0xf]
    %v2596 = vld [vmem:[%s5 + $0xc8] sm:$0xf]
    %v2597 = vld [vmem:[%s5 + $0xcc] sm:$0xf]
    %v2598 = vld [vmem:[%s5 + $0xd0] sm:$0xf]
    %v2599 = vld [vmem:[%s5 + $0xd4] sm:$0xf]
    %v2600 = vld [vmem:[%s5 + $0xd8] sm:$0xf]
    %v2601 = vld [vmem:[%s5 + $0xdc] sm:$0xf]
    %v2602 = vld [vmem:[%s5 + $0xe0] sm:$0xf]
    %v2603 = vld [vmem:[%s5 + $0xe4] sm:$0xf]
    %v2604 = vld [vmem:[%s5 + $0xe8] sm:$0xf]
    %v2605 = vld [vmem:[%s5 + $0xec] sm:$0xf]
    %v2606 = vld [vmem:[%s5 + $0xf0] sm:$0xf]
    %v2607 = vld [vmem:[%s5 + $0xf4] sm:$0xf]
    %v2608 = vld [vmem:[%s5 + $0xf8] sm:$0xf]
    %v2609 = vld [vmem:[%s5 + $0xfc] sm:$0xf]
    %v2610 = vld [vmem:[%s5 + $0x100] sm:$0xf]
    %v2611 = vld [vmem:[%s5 + $0x104] sm:$0xf]
    %v2612 = vld [vmem:[%s5 + $0x108] sm:$0xf]
    %v2613 = vld [vmem:[%s5 + $0x10c] sm:$0xf]
    %v2614 = vld [vmem:[%s5 + $0x110] sm:$0xf]
    %v2615 = vld [vmem:[%s5 + $0x114] sm:$0xf]
    %v2616 = vld [vmem:[%s5 + $0x118] sm:$0xf]
    %v2617 = vld [vmem:[%s5 + $0x11c] sm:$0xf]
    %v2618 = vld [vmem:[%s5 + $0x120] sm:$0xf]
    %v2619 = vld [vmem:[%s5 + $0x124] sm:$0xf]
    %v2620 = vld [vmem:[%s5 + $0x128] sm:$0xf]
    %v2621 = vld [vmem:[%s5 + $0x12c] sm:$0xf]
    %v2622 = vld [vmem:[%s5 + $0x130] sm:$0xf]
    %v2623 = vld [vmem:[%s5 + $0x134] sm:$0xf]
    %v2624 = vld [vmem:[%s5 + $0x138] sm:$0xf]
    %v2625 = vld [vmem:[%s5 + $0x13c] sm:$0xf]
    %v2626 = vld [vmem:[%s6] sm:$0x1]
    %v2628 = vperm.slane %v2626, 0
    %v2710 = vunpack.c.l.b16 %v2546
    %v2711 = vunpack.c.l.b16 %v2547
    %v2712 = vunpack.c.l.b16 %v2548
    %v2713 = vunpack.c.l.b16 %v2549
    %v2714 = vunpack.c.l.b16 %v2550
    %v2715 = vunpack.c.l.b16 %v2551
    %v2716 = vunpack.c.l.b16 %v2552
    %v2717 = vunpack.c.l.b16 %v2553
    %v2718 = vunpack.c.l.b16 %v2554
    %v2719 = vunpack.c.l.b16 %v2555
    %v2720 = vunpack.c.l.b16 %v2556
    %v2721 = vunpack.c.l.b16 %v2557
    %v2722 = vunpack.c.l.b16 %v2558
    %v2723 = vunpack.c.l.b16 %v2559
    %v2724 = vunpack.c.l.b16 %v2560
    %v2725 = vunpack.c.l.b16 %v2561
    %v2726 = vunpack.c.l.b16 %v2562
    %v2727 = vunpack.c.l.b16 %v2563
    %v2728 = vunpack.c.l.b16 %v2564
    %v2729 = vunpack.c.l.b16 %v2565
    %v2730 = vunpack.c.l.b16 %v2566
    %v2731 = vunpack.c.l.b16 %v2567
    %v2732 = vunpack.c.l.b16 %v2568
    %v2733 = vunpack.c.l.b16 %v2569
    %v2734 = vunpack.c.l.b16 %v2570
    %v2735 = vunpack.c.l.b16 %v2571
    %v2736 = vunpack.c.l.b16 %v2572
    %v2737 = vunpack.c.l.b16 %v2573
    %v2738 = vunpack.c.l.b16 %v2574
    %v2739 = vunpack.c.l.b16 %v2575
    %v2740 = vunpack.c.l.b16 %v2576
    %v2741 = vunpack.c.l.b16 %v2577
    %v2742 = vunpack.c.l.b16 %v2578
    %v2743 = vunpack.c.l.b16 %v2579
    %v2744 = vunpack.c.l.b16 %v2580
    %v2745 = vunpack.c.l.b16 %v2581
    %v2746 = vunpack.c.l.b16 %v2582
    %v2747 = vunpack.c.l.b16 %v2583
    %v2748 = vunpack.c.l.b16 %v2584
    %v2749 = vunpack.c.l.b16 %v2585
    %v2750 = vunpack.c.l.b16 %v2586
    %v2751 = vunpack.c.l.b16 %v2587
    %v2752 = vunpack.c.l.b16 %v2588
    %v2753 = vunpack.c.l.b16 %v2589
    %v2754 = vunpack.c.l.b16 %v2590
    %v2755 = vunpack.c.l.b16 %v2591
    %v2756 = vunpack.c.l.b16 %v2592
    %v2757 = vunpack.c.l.b16 %v2593
    %v2758 = vunpack.c.l.b16 %v2594
    %v2759 = vunpack.c.l.b16 %v2595
    %v2760 = vunpack.c.l.b16 %v2596
    %v2761 = vunpack.c.l.b16 %v2597
    %v2762 = vunpack.c.l.b16 %v2598
    %v2763 = vunpack.c.l.b16 %v2599
    %v2764 = vunpack.c.l.b16 %v2600
    %v2765 = vunpack.c.l.b16 %v2601
    %v2766 = vunpack.c.l.b16 %v2602
    %v2767 = vunpack.c.l.b16 %v2603
    %v2768 = vunpack.c.l.b16 %v2604
    %v2769 = vunpack.c.l.b16 %v2605
    %v2770 = vunpack.c.l.b16 %v2606
    %v2771 = vunpack.c.l.b16 %v2607
    %v2772 = vunpack.c.l.b16 %v2608
    %v2773 = vunpack.c.l.b16 %v2609
    %v2774 = vunpack.c.l.b16 %v2610
    %v2775 = vunpack.c.l.b16 %v2611
    %v2776 = vunpack.c.l.b16 %v2612
    %v2777 = vunpack.c.l.b16 %v2613
    %v2778 = vunpack.c.l.b16 %v2614
    %v2779 = vunpack.c.l.b16 %v2615
    %v2780 = vunpack.c.l.b16 %v2616
    %v2781 = vunpack.c.l.b16 %v2617
    %v2782 = vunpack.c.l.b16 %v2618
    %v2783 = vunpack.c.l.b16 %v2619
    %v2784 = vunpack.c.l.b16 %v2620
    %v2785 = vunpack.c.l.b16 %v2621
    %v2786 = vunpack.c.l.b16 %v2622
    %v2787 = vunpack.c.l.b16 %v2623
    %v2788 = vunpack.c.l.b16 %v2624
    %v2789 = vunpack.c.l.b16 %v2625
    %v2790 = vpack.c.b16 %v2711, %v2710
    %v2791 = vpack.c.b16 %v2713, %v2712
    %v2792 = vpack.c.b16 %v2715, %v2714
    %v2793 = vpack.c.b16 %v2717, %v2716
    %v2794 = vpack.c.b16 %v2719, %v2718
    %v2795 = vpack.c.b16 %v2721, %v2720
    %v2796 = vpack.c.b16 %v2723, %v2722
    %v2797 = vpack.c.b16 %v2725, %v2724
    %v2798 = vpack.c.b16 %v2727, %v2726
    %v2799 = vpack.c.b16 %v2729, %v2728
    %v2800 = vpack.c.b16 %v2731, %v2730
    %v2801 = vpack.c.b16 %v2733, %v2732
    %v2802 = vpack.c.b16 %v2735, %v2734
    %v2803 = vpack.c.b16 %v2737, %v2736
    %v2804 = vpack.c.b16 %v2739, %v2738
    %v2805 = vpack.c.b16 %v2741, %v2740
    %v2806 = vpack.c.b16 %v2743, %v2742
    %v2807 = vpack.c.b16 %v2745, %v2744
    %v2808 = vpack.c.b16 %v2747, %v2746
    %v2809 = vpack.c.b16 %v2749, %v2748
    %v2810 = vpack.c.b16 %v2751, %v2750
    %v2811 = vpack.c.b16 %v2753, %v2752
    %v2812 = vpack.c.b16 %v2755, %v2754
    %v2813 = vpack.c.b16 %v2757, %v2756
    %v2814 = vpack.c.b16 %v2759, %v2758
    %v2815 = vpack.c.b16 %v2761, %v2760
    %v2816 = vpack.c.b16 %v2763, %v2762
    %v2817 = vpack.c.b16 %v2765, %v2764
    %v2818 = vpack.c.b16 %v2767, %v2766
    %v2819 = vpack.c.b16 %v2769, %v2768
    %v2820 = vpack.c.b16 %v2771, %v2770
    %v2821 = vpack.c.b16 %v2773, %v2772
    %v2822 = vpack.c.b16 %v2775, %v2774
    %v2823 = vpack.c.b16 %v2777, %v2776
    %v2824 = vpack.c.b16 %v2779, %v2778
    %v2825 = vpack.c.b16 %v2781, %v2780
    %v2826 = vpack.c.b16 %v2783, %v2782
    %v2827 = vpack.c.b16 %v2785, %v2784
    %v2828 = vpack.c.b16 %v2787, %v2786
    %v2829 = vpack.c.b16 %v2789, %v2788
    %2870 = vmatpush.bf16.msra.mxu0 %v2797
    %2871 = vmatpush.bf16.msra.mxu0 %v2796
    %2872 = vmatpush.bf16.msra.mxu0 %v2795
    %2873 = vmatpush.bf16.msra.mxu0 %v2794
    %2874 = vmatpush.bf16.msra.mxu0 %v2793
    %2875 = vmatpush.bf16.msra.mxu0 %v2792
    %2876 = vmatpush.bf16.msra.mxu0 %v2791
    %2877 = vmatpush.bf16.msra.mxu0 %v2790
    %2878 = vmatmul.bf16.gmra.mxu0 %v2541
    %v2879 = vpop.f32.mrf.mxu0
    %v2880 = vadd.f32 %v2628, %v2879
    %v2881 = vpop.f32.mrf.mxu0
    %2882 = vdwg.mxu0
    %2883 = vmatpush.bf16.msra.mxu0 %v2805
    %2884 = vmatpush.bf16.msra.mxu0 %v2804
    %2885 = vmatpush.bf16.msra.mxu0 %v2803
    %2886 = vmatpush.bf16.msra.mxu0 %v2802
    %2887 = vmatpush.bf16.msra.mxu0 %v2801
    %2888 = vmatpush.bf16.msra.mxu0 %v2800
    %2889 = vmatpush.bf16.msra.mxu0 %v2799
    %2890 = vmatpush.bf16.msra.mxu0 %v2798
    %2891 = vmatmul.bf16.gmra.mxu0 %v2542
    %v2892 = vpop.f32.mrf.mxu0
    %v2893 = vadd.f32 %v2880, %v2892
    %v2894 = vpop.f32.mrf.mxu0
    %2895 = vdwg.mxu0
    %2896 = vmatpush.bf16.msra.mxu0 %v2813
    %2897 = vmatpush.bf16.msra.mxu0 %v2812
    %2898 = vmatpush.bf16.msra.mxu0 %v2811
    %2899 = vmatpush.bf16.msra.mxu0 %v2810
    %2900 = vmatpush.bf16.msra.mxu0 %v2809
    %2901 = vmatpush.bf16.msra.mxu0 %v2808
    %2902 = vmatpush.bf16.msra.mxu0 %v2807
    %2903 = vmatpush.bf16.msra.mxu0 %v2806
    %2904 = vmatmul.bf16.gmra.mxu0 %v2543
    %v2905 = vpop.f32.mrf.mxu0
    %v2906 = vadd.f32 %v2893, %v2905
    %v2907 = vpop.f32.mrf.mxu0
    %2908 = vdwg.mxu0
    %2909 = vmatpush.bf16.msra.mxu0 %v2821
    %2910 = vmatpush.bf16.msra.mxu0 %v2820
    %2911 = vmatpush.bf16.msra.mxu0 %v2819
    %2912 = vmatpush.bf16.msra.mxu0 %v2818
    %2913 = vmatpush.bf16.msra.mxu0 %v2817
    %2914 = vmatpush.bf16.msra.mxu0 %v2816
    %2915 = vmatpush.bf16.msra.mxu0 %v2815
    %2916 = vmatpush.bf16.msra.mxu0 %v2814
    %2917 = vmatmul.bf16.gmra.mxu0 %v2544
    %v2918 = vpop.f32.mrf.mxu0
    %v2919 = vadd.f32 %v2906, %v2918
    %v2920 = vpop.f32.mrf.mxu0
    %2921 = vdwg.mxu0
    %2922 = vmatpush.bf16.msra.mxu0 %v2829
    %2923 = vmatpush.bf16.msra.mxu0 %v2828
    %2924 = vmatpush.bf16.msra.mxu0 %v2827
    %2925 = vmatpush.bf16.msra.mxu0 %v2826
    %2926 = vmatpush.bf16.msra.mxu0 %v2825
    %2927 = vmatpush.bf16.msra.mxu0 %v2824
    %2928 = vmatpush.bf16.msra.mxu0 %v2823
    %2929 = vmatpush.bf16.msra.mxu0 %v2822
    %2930 = vmatmul.bf16.gmra.mxu0 %v2545
    %v2931 = vpop.f32.mrf.mxu0
    %v2932 = vadd.f32 %v2919, %v2931
    %v2933 = vpop.f32.mrf.mxu0
    %2934 = vdwg.mxu0
    %v2935 = vmax.f32 %v2932, 0.0
    %v2936 = vpack.c.bf16 %v2935, %v2935
    %v2937 = vld [vmem:[%s7] sm:$0xf]
    %v2938 = vld [vmem:[%s7 + $0x4] sm:$0xf]
    %v2939 = vld [vmem:[%s7 + $0x8] sm:$0xf]
    %v2940 = vld [vmem:[%s7 + $0xc] sm:$0xf]
    %v2941 = vld [vmem:[%s7 + $0x10] sm:$0xf]
    %v2942 = vld [vmem:[%s7 + $0x14] sm:$0xf]
    %v2943 = vld [vmem:[%s7 + $0x18] sm:$0xf]
    %v2944 = vld [vmem:[%s7 + $0x1c] sm:$0xf]
    %v2945 = vld [vmem:[%s7 + $0x20] sm:$0xf]
    %v2946 = vld [vmem:[%s7 + $0x24] sm:$0xf]
    %v2947 = vld [vmem:[%s7 + $0x28] sm:$0xf]
    %v2948 = vld [vmem:[%s7 + $0x2c] sm:$0xf]
    %v2949 = vld [vmem:[%s7 + $0x30] sm:$0xf]
    %v2950 = vld [vmem:[%s7 + $0x34] sm:$0xf]
    %v2951 = vld [vmem:[%s7 + $0x38] sm:$0xf]
    %v2952 = vld [vmem:[%s8] sm:$0x1]
    %v2954 = vperm.slane %v2952, 0
    %v2971 = vunpack.c.l.b16 %v2937
    %v2972 = vunpack.c.l.b16 %v2938
    %v2973 = vunpack.c.l.b16 %v2939
    %v2974 = vunpack.c.l.b16 %v2940
    %v2975 = vunpack.c.l.b16 %v2941
    %v2976 = vunpack.c.l.b16 %v2942
    %v2977 = vunpack.c.l.b16 %v2943
    %v2978 = vunpack.c.l.b16 %v2944
    %v2979 = vunpack.c.l.b16 %v2945
    %v2980 = vunpack.c.l.b16 %v2946
    %v2981 = vunpack.c.l.b16 %v2947
    %v2982 = vunpack.c.l.b16 %v2948
    %v2983 = vunpack.c.l.b16 %v2949
    %v2984 = vunpack.c.l.b16 %v2950
    %v2985 = vunpack.c.l.b16 %v2951
    %v2986 = vpack.c.b16 %v2972, %v2971
    %v2987 = vpack.c.b16 %v2974, %v2973
    %v2988 = vpack.c.b16 %v2976, %v2975
    %v2989 = vpack.c.b16 %v2978, %v2977
    %v2990 = vpack.c.b16 %v2980, %v2979
    %v2991 = vpack.c.b16 %v2982, %v2981
    %v2992 = vpack.c.b16 %v2984, %v2983
    %v2993 = vpack.c.b16 %v2985, %v2985
    %vm3001 = vcmask 982016
    %v3003 = vsel %vm3001, %v2936, 0
    %v3006 = vsel %vm163, %v2993, 0
    %3008 = vmatpush.bf16.msra.mxu0 %v3006
    %3009 = vmatpush.bf16.msra.mxu0 %v2992
    %3010 = vmatpush.bf16.msra.mxu0 %v2991
    %3011 = vmatpush.bf16.msra.mxu0 %v2990
    %3012 = vmatpush.bf16.msra.mxu0 %v2989
    %3013 = vmatpush.bf16.msra.mxu0 %v2988
    %3014 = vmatpush.bf16.msra.mxu0 %v2987
    %3015 = vmatpush.bf16.msra.mxu0 %v2986
    %3016 = vmatmul.bf16.gmra.mxu0 %v3003
    %v3017 = vpop.f32.mrf.mxu0
    %v3018 = vadd.f32 %v2954, %v3017
    %v3019 = vpop.f32.mrf.mxu0
    %3020 = vdwg.mxu0
    %v3021 = vmax.f32 %v3018, 0.0
    %v3022 = vpack.c.bf16 %v3021, %v3021
    %v3023 = vld [vmem:[%s9] sm:$0xf]
    %v3024 = vld [vmem:[%s9 + $0x4] sm:$0xf]
    %v3025 = vld [vmem:[%s9 + $0x8] sm:$0xf]
    %v3026 = vld [vmem:[%s9 + $0xc] sm:$0xf]
    %v3027 = vld [vmem:[%s9 + $0x10] sm:$0xf]
    %v3028 = vld [vmem:[%s9 + $0x14] sm:$0xf]
    %v3029 = vld [vmem:[%s9 + $0x18] sm:$0xf]
    %v3030 = vld [vmem:[%s9 + $0x1c] sm:$0xf]
    %v3031 = vld [vmem:[%s9 + $0x20] sm:$0xf]
    %v3032 = vld [vmem:[%s9 + $0x24] sm:$0xf]
    %v3033 = vld [vmem:[%s9 + $0x28] sm:$0x3]
    %v3034 = vld [vmem:[%s10] sm:$0x1]
    %v3036 = vperm.slane %v3034, 0
    %v3049 = vunpack.c.l.b16 %v3023
    %v3050 = vunpack.c.l.b16 %v3024
    %v3051 = vunpack.c.l.b16 %v3025
    %v3052 = vunpack.c.l.b16 %v3026
    %v3053 = vunpack.c.l.b16 %v3027
    %v3054 = vunpack.c.l.b16 %v3028
    %v3055 = vunpack.c.l.b16 %v3029
    %v3056 = vunpack.c.l.b16 %v3030
    %v3057 = vunpack.c.l.b16 %v3031
    %v3058 = vunpack.c.l.b16 %v3032
    %v3059 = vunpack.c.l.b16 %v3033
    %v3060 = vpack.c.b16 %v3050, %v3049
    %v3061 = vpack.c.b16 %v3052, %v3051
    %v3062 = vpack.c.b16 %v3054, %v3053
    %v3063 = vpack.c.b16 %v3056, %v3055
    %v3064 = vpack.c.b16 %v3058, %v3057
    %v3065 = vpack.c.b16 %v3059, %v3059
    %vm3071 = vcmask 687104
    %v3073 = vsel %vm3071, %v3022, 0
    %v3076 = vsel %vm156, %v3065, 0
    %3078 = vmatpush.bf16.msra.mxu0 0
    %3079 = vmatpush.bf16.msra.mxu0 0
    %3080 = vmatpush.bf16.msra.mxu0 %v3076
    %3081 = vmatpush.bf16.msra.mxu0 %v3064
    %3082 = vmatpush.bf16.msra.mxu0 %v3063
    %3083 = vmatpush.bf16.msra.mxu0 %v3062
    %3084 = vmatpush.bf16.msra.mxu0 %v3061
    %3085 = vmatpush.bf16.msra.mxu0 %v3060
    %3086 = vmatmul.bf16.gmra.mxu0 %v3073
    %v3087 = vpop.f32.mrf.mxu0
    %v3088 = vadd.f32 %v3036, %v3087
    %v3089 = vpop.f32.mrf.mxu0
    %3090 = vdwg.mxu0
    %3091 = vst [vmem:[#allocation5] sm:$0x3] %v3088
    // Predicated region
    $region50: #{cnn_cifar_forward.1} parent=1 // pred_check
      _
    $region51: #{cnn_cifar_forward.1} parent=1 // pred_check_branch
      %3093 = sbr.rel (0) target = $region53
    $region52: #{cnn_cifar_forward.1} parent=1 // pred_region
      %3095 = vsyncadd [#allocation4], 0
      %s3097 = sshll.u32 [#allocation5], 4
      %s3098 = int_to_ptr.vmem [resolvable:$true] %s3097
      %s3099 = sshll.u32 %s11, 4
      %s3100 = int_to_ptr.hbm [resolvable:$true] %s3099
      %3102 = dma.vmem_to_hbm [thread:$0]  %s3098, 32, %s3100, [#allocation4]
    $region53: #{cnn_cifar_forward.1} parent=1 // pred_fallthru
      _
    // Predicated region
    $region54: #{cnn_cifar_forward.1} parent=1 // pred_check
      _
    $region55: #{cnn_cifar_forward.1} parent=1 // pred_check_branch
      %3104 = sbr.rel (0) target = $region57
    $region56: #{cnn_cifar_forward.1} parent=1 // pred_region
      %3106 = dma.done [#allocation4], 32
    $region57: #{cnn_cifar_forward.1} parent=1 // pred_fallthru
      _
    %3107 = vsyncpa [#allocation3], 1
    %3108 = vsyncpa [#allocation4], 1

</llo_original>
